<compile_context>
chip_gen: v5e
topology: v5e:2x2
jax: 0.10.0
libtpu: 0.0.40
codegen_flags: <defaults>
</compile_context>

<pallas_src>
import jax
import jax.numpy as jnp
from jax import lax
from jax.experimental import pallas as pl
from jax.experimental.pallas import tpu as pltpu

# ---- synthetic encoder config (small, consistent with a tiny BERT) ----------
VOCAB = 128        # vocab size (kept at a lane-dense 128 for the one-hot matmul)
B = 2              # batch
S = 8              # sequence length
BS = B * S         # collapsed batch*seq rows
H = 32             # hidden size
NH = 2             # attention heads
HD = H // NH       # head dim
F = 64             # FFN intermediate size
L = 2              # number of transformer layers
LN_EPS = 1e-12
NEG = -1e9

VEC_W = 128              # lane-dense packed small-vector row width (>= 3H)
ROWS_PER_LAYER = 8       # bqkv, bo, ln1_g, ln1_b, b1, b2, ln2_g, ln2_b


def _layernorm(x, g, b):
    mu = jnp.mean(x, axis=-1, keepdims=True)
    var = jnp.mean((x - mu) ** 2, axis=-1, keepdims=True)
    return (x - mu) * lax.rsqrt(var + LN_EPS) * g + b


def encoder_layer_kernel(onehot_ref,   # (BS, VOCAB) f32   one-hot input ids
                         tok_ref,      # (VOCAB, H)  f32   token embedding table
                         pos_ref,      # (S, H)      f32   position embedding table
                         bias_ref,     # (B, S, S)   f32   per-sequence key-padding bias
                         glob_ref,     # (2, VEC_W)  f32   embedding LN gamma/beta
                         vecl_ref,     # (1, ROWS_PER_LAYER, VEC_W) f32 this layer's vectors
                         wqkv_ref,     # (1, H, 3H)  bf16  streamed per layer
                         wo_ref,       # (1, H, H)   bf16
                         w1_ref,       # (1, H, F)   bf16
                         w2_ref,       # (1, F, H)   bf16
                         cls_ref,      # out (B, H)  f32
                         x_scr):       # scratch (BS, H) f32  residual carried across layers
    layer = pl.program_id(0)
    f32 = jnp.float32
    bf16 = jnp.bfloat16

    # ---- layer 0: embeddings via one one-hot MXU matmul (no scalar gather) ----
    @pl.when(layer == 0)
    def _():
        tok = jnp.dot(onehot_ref[...], tok_ref[...],
                      preferred_element_type=f32)                  # [BS, H]
        x0 = tok.reshape(B, S, H) + pos_ref[...].reshape(1, S, H)
        x0 = x0.reshape(BS, H)
        x_scr[...] = _layernorm(x0, glob_ref[0:1, :H], glob_ref[1:2, :H])

    x = x_scr[...]                       # [BS, H] f32 residual stream
    vec = vecl_ref[0]                    # [ROWS_PER_LAYER, VEC_W]
    wqkv = wqkv_ref[0]                   # [H, 3H] bf16
    wo = wo_ref[0]                       # [H, H]  bf16
    w1 = w1_ref[0]                       # [H, F]  bf16
    w2 = w2_ref[0]                       # [F, H]  bf16
    bias = bias_ref[...]                 # [B, S, S] additive padding mask

    # ---- fused QKV projection (bf16 MXU operands, f32 accumulation) ----
    xb = x.astype(bf16)                  # hoisted: single bf16 cast of the residual
    qkv = jnp.dot(xb, wqkv, preferred_element_type=f32) + vec[0:1, :3 * H]   # [BS, 3H]
    qkv3 = qkv.reshape(B, S, 3 * H)      # leading per-sequence batch dim (pure reshape)

    scale = 1.0 / (HD ** 0.5)
    attn = jnp.zeros((BS, H), f32)
    # TODO(synk): at real sizes merge NH into the dot_general batch dim
    # ((B*NH, S, HD)); at NH=2 / HD=16 the relayout costs more than it saves.
    for h in range(NH):
        qh = qkv3[:, :, h * HD:(h + 1) * HD].astype(bf16)
        kh = qkv3[:, :, H + h * HD:H + (h + 1) * HD].astype(bf16)
        vh = qkv3[:, :, 2 * H + h * HD:2 * H + (h + 1) * HD].astype(bf16)
        # per-sequence scores [B, S, S]: no cross-sequence FLOPs, no [BS,BS] bias
        s = lax.dot_general(qh, kh, (((2,), (2,)), ((0,), (0,))),
                            preferred_element_type=f32) * scale
        s = s + bias
        m = jnp.max(s, axis=-1, keepdims=True)
        p = jnp.exp(s - m)
        p = p * pl.reciprocal(jnp.sum(p, axis=-1, keepdims=True), approx=True)
        ctx = lax.dot_general(p.astype(bf16), vh, (((2,), (1,)), ((0,), (0,))),
                              preferred_element_type=f32)          # [B, S, HD]
        # fold Wo per head and accumulate: no ctx concat / relayout
        attn = attn + jnp.dot(ctx.reshape(BS, HD).astype(bf16),
                              wo[h * HD:(h + 1) * HD, :],
                              preferred_element_type=f32)
    attn = attn + vec[1:2, :H]

    # residual + LN
    x = _layernorm(x + attn, vec[2:3, :H], vec[3:4, :H])

    # ---- FFN (GELU, tanh approximation) ----
    hdn = jnp.dot(x.astype(bf16), w1, preferred_element_type=f32) + vec[4:5, :F]
    hdn = jax.nn.gelu(hdn, approximate=True)
    ffn = jnp.dot(hdn.astype(bf16), w2, preferred_element_type=f32) + vec[5:6, :H]

    # residual + LN; carry to next layer via scratch
    x = _layernorm(x + ffn, vec[6:7, :H], vec[7:8, :H])
    x_scr[...] = x

    # ---- CLS embedding = hidden state of token 0 of every sequence ----------
    @pl.when(layer == pl.num_programs(0) - 1)
    def _():
        cls_rows = jnp.concatenate([x[b * S:b * S + 1, :] for b in range(B)], axis=0)
        cls_ref[...] = cls_rows.astype(cls_ref.dtype)


def init_params(key):
    ks = jax.random.split(key, 8)
    s = 0.02
    tok_emb = s * jax.random.normal(ks[0], (VOCAB, H), jnp.float32)
    pos_emb = s * jax.random.normal(ks[1], (S, H), jnp.float32)
    wq = s * jax.random.normal(ks[2], (L, H, H), jnp.float32)
    wk = s * jax.random.normal(ks[3], (L, H, H), jnp.float32)
    wv = s * jax.random.normal(ks[4], (L, H, H), jnp.float32)
    wo = s * jax.random.normal(ks[5], (L, H, H), jnp.float32)
    w1 = s * jax.random.normal(ks[6], (L, H, F), jnp.float32)
    w2 = s * jax.random.normal(ks[7], (L, F, H), jnp.float32)
    wqkv = jnp.concatenate([wq, wk, wv], axis=-1)          # [L, H, 3H]

    # pack small vector params (biases + LN gains/offsets) into lane-dense rows.
    def row(v):
        r = jnp.zeros((VEC_W,), jnp.float32)
        return r.at[:v.shape[0]].set(v)

    ones_h = jnp.ones((H,), jnp.float32)
    zeros_h = jnp.zeros((H,), jnp.float32)
    glob = jnp.stack([row(ones_h), row(zeros_h)], axis=0)  # embedding LN gamma/beta

    zeros_3h = jnp.zeros((3 * H,), jnp.float32)
    zeros_f = jnp.zeros((F,), jnp.float32)
    layer_rows = [zeros_3h, zeros_h,          # bqkv, bo
                  ones_h, zeros_h,            # ln1 gamma/beta
                  zeros_f, zeros_h,           # b1, b2
                  ones_h, zeros_h]            # ln2 gamma/beta
    one_layer = jnp.stack([row(v) for v in layer_rows], axis=0)      # [8, VEC_W]
    vecl = jnp.tile(one_layer[None], (L, 1, 1))                      # [L, 8, VEC_W]

    return {
        "tok_emb": tok_emb,
        "pos_emb": pos_emb,
        "glob": glob,
        "vecl": vecl,
        "wqkv": wqkv.astype(jnp.bfloat16),
        "wo": wo.astype(jnp.bfloat16),
        "w1": w1.astype(jnp.bfloat16),
        "w2": w2.astype(jnp.bfloat16),
    }


@jax.jit
def feature_extractor(input_ids, attention_mask, params):
    """Returns cls_embedding [B, H] (== outputs.last_hidden_state[:, 0, :])."""
    # one-hot ids for the in-kernel embedding matmul (VOCAB is lane-dense 128)
    onehot = jax.nn.one_hot(input_ids.reshape(-1), VOCAB, dtype=jnp.float32)   # [BS, VOCAB]
    # per-sequence additive key-padding bias: 0 where key kept, -1e9 where padded
    key_bias = (attention_mask.astype(jnp.float32) - 1.0) * (-NEG) * (-1.0)    # [B, S]
    attn_bias = jnp.broadcast_to(key_bias[:, None, :], (B, S, S))              # [B, S, S]

    def resident(shape):
        return pl.BlockSpec(shape, lambda l: (0,) * len(shape))

    def per_layer(shape):
        return pl.BlockSpec(shape, lambda l: (l,) + (0,) * (len(shape) - 1))

    in_specs = [
        resident((BS, VOCAB)),                       # one-hot ids
        resident((VOCAB, H)),                        # token embedding table
        resident((S, H)),                            # position embedding table
        resident((B, S, S)),                         # padding bias
        resident((2, VEC_W)),                        # embedding LN params
        per_layer((1, ROWS_PER_LAYER, VEC_W)),       # per-layer biases / LN params
        per_layer((1, H, 3 * H)),                    # fused QKV weights (bf16)
        per_layer((1, H, H)),                        # Wo (bf16)
        per_layer((1, H, F)),                        # W1 (bf16)
        per_layer((1, F, H)),                        # W2 (bf16)
    ]
    out_spec = pl.BlockSpec((B, H), lambda l: (0, 0))

    cls = pl.pallas_call(
        encoder_layer_kernel,
        out_shape=jax.ShapeDtypeStruct((B, H), jnp.float32),
        grid=(L,),                                   # streamed layer axis
        in_specs=in_specs,
        out_specs=out_spec,
        scratch_shapes=[pltpu.VMEM((BS, H), jnp.float32)],   # residual carried across layers
        compiler_params=pltpu.CompilerParams(
            dimension_semantics=("arbitrary",),
            vmem_limit_bytes=32 << 20),
    )(onehot, params["tok_emb"], params["pos_emb"], attn_bias,
      params["glob"], params["vecl"], params["wqkv"], params["wo"],
      params["w1"], params["w2"])
    return cls


if __name__ == "__main__":
    key = jax.random.PRNGKey(0)
    k_param, k_ids = jax.random.split(key)
    params = init_params(k_param)

    input_ids = jax.random.randint(k_ids, (B, S), 0, VOCAB, dtype=jnp.int32)
    # second sequence has two padding positions (masked out)
    attention_mask = jnp.array(
        [[1, 1, 1, 1, 1, 1, 1, 1],
         [1, 1, 1, 1, 1, 1, 0, 0]], dtype=jnp.int32)

    cls_embedding = feature_extractor(input_ids, attention_mask, params)
    cls_embedding = jax.block_until_ready(cls_embedding)

    assert cls_embedding.shape == (B, H)
    assert bool(jnp.all(jnp.isfinite(cls_embedding)))
    print("KERNEL_OK")
</pallas_src>

<mosaic_0001>
module attributes {stable_mosaic.version = 11 : i64} {
  func.func @encoder_layer_kernel(%arg0: i32, %arg1: memref<16x128xf32, #tpu.memory_space<vmem>>, %arg2: memref<128x32xf32, #tpu.memory_space<vmem>>, %arg3: memref<8x32xf32, #tpu.memory_space<vmem>>, %arg4: memref<2x8x8xf32, #tpu.memory_space<vmem>>, %arg5: memref<2x128xf32, #tpu.memory_space<vmem>>, %arg6: memref<1x8x128xf32, #tpu.memory_space<vmem>>, %arg7: memref<1x32x96xbf16, #tpu.memory_space<vmem>>, %arg8: memref<1x32x32xbf16, #tpu.memory_space<vmem>>, %arg9: memref<1x32x64xbf16, #tpu.memory_space<vmem>>, %arg10: memref<1x64x32xbf16, #tpu.memory_space<vmem>>, %arg11: memref<2x32xf32, #tpu.memory_space<vmem>>, %arg12: memref<16x32xf32, #tpu.memory_space<vmem>>) attributes {dimension_semantics = [#tpu.dimension_semantics<arbitrary>], iteration_bounds = array<i64: 2>, scalar_prefetch = 0 : i64, scratch_operands = 1 : i64, tpu.core_type = #tpu.core_type<tc>, window_params = [{pipeline_mode = #tpu.pipeline_mode<synchronous>, transform_indices = @transform_0, window_bounds = array<i64: 16, 128>}, {pipeline_mode = #tpu.pipeline_mode<synchronous>, transform_indices = @transform_1, window_bounds = array<i64: 128, 32>}, {pipeline_mode = #tpu.pipeline_mode<synchronous>, transform_indices = @transform_2, window_bounds = array<i64: 8, 32>}, {pipeline_mode = #tpu.pipeline_mode<synchronous>, transform_indices = @transform_3, window_bounds = array<i64: 2, 8, 8>}, {pipeline_mode = #tpu.pipeline_mode<synchronous>, transform_indices = @transform_4, window_bounds = array<i64: 2, 128>}, {transform_indices = @transform_5, window_bounds = array<i64: 1, 8, 128>}, {transform_indices = @transform_6, window_bounds = array<i64: 1, 32, 96>}, {transform_indices = @transform_7, window_bounds = array<i64: 1, 32, 32>}, {transform_indices = @transform_8, window_bounds = array<i64: 1, 32, 64>}, {transform_indices = @transform_9, window_bounds = array<i64: 1, 64, 32>}, {pipeline_mode = #tpu.pipeline_mode<synchronous>, transform_indices = @transform_10, window_bounds = array<i64: 2, 32>}]} {
    %c0_i32 = arith.constant 0 : i32
    %0 = arith.cmpi eq, %arg0, %c0_i32 : i32
    %1 = arith.extui %0 : i1 to i32
    %c0_i32_0 = arith.constant 0 : i32
    %2 = arith.cmpi ne, %1, %c0_i32_0 : i32
    scf.if %2 {
      %c0_52 = arith.constant 0 : index
      %c0_53 = arith.constant 0 : index
      %156 = vector.load %arg1[%c0_52, %c0_53] : memref<16x128xf32, #tpu.memory_space<vmem>>, vector<16x128xf32>
      %c0_54 = arith.constant 0 : index
      %c0_55 = arith.constant 0 : index
      %157 = vector.load %arg2[%c0_54, %c0_55] : memref<128x32xf32, #tpu.memory_space<vmem>>, vector<128x32xf32>
      %cst_56 = arith.constant dense<0.000000e+00> : vector<16x32xf32>
      %158 = tpu.matmul %156, %157, %cst_56 {dimension_numbers = #tpu.dot_dimension_numbers<[1], [0], [0], [1], [0, 0, 1, 1], [], []>} : vector<16x128xf32>, vector<128x32xf32>, vector<16x32xf32> -> vector<16x32xf32>
      %159 = vector.shape_cast %158 : vector<16x32xf32> to vector<2x8x32xf32>
      %c0_57 = arith.constant 0 : index
      %c0_58 = arith.constant 0 : index
      %160 = vector.load %arg3[%c0_57, %c0_58] : memref<8x32xf32, #tpu.memory_space<vmem>>, vector<8x32xf32>
      %161 = vector.shape_cast %160 : vector<8x32xf32> to vector<1x8x32xf32>
      %162 = vector.broadcast %161 : vector<1x8x32xf32> to vector<2x8x32xf32>
      %163 = arith.addf %159, %162 : vector<2x8x32xf32>
      %164 = vector.shape_cast %163 : vector<2x8x32xf32> to vector<16x32xf32>
      %c0_59 = arith.constant 0 : index
      %c0_60 = arith.constant 0 : index
      %165 = vector.load %arg5[%c0_59, %c0_60] : memref<2x128xf32, #tpu.memory_space<vmem>>, vector<1x32xf32>
      %c1 = arith.constant 1 : index
      %c0_61 = arith.constant 0 : index
      %166 = vector.load %arg5[%c1, %c0_61] : memref<2x128xf32, #tpu.memory_space<vmem>>, vector<1x32xf32>
      %cst_62 = arith.constant dense<0.000000e+00> : vector<16xf32>
      %167 = vector.multi_reduction <add>, %164, %cst_62 [1] : vector<16x32xf32> to vector<16xf32>
      %168 = vector.shape_cast %167 : vector<16xf32> to vector<16x1xf32>
      %cst_63 = arith.constant 3.200000e+01 : f32
      %169 = vector.broadcast %cst_63 : f32 to vector<16x1xf32>
      %170 = arith.divf %168, %169 : vector<16x1xf32>
      %171 = vector.broadcast %170 : vector<16x1xf32> to vector<16x32xf32>
      %172 = arith.subf %164, %171 : vector<16x32xf32>
      %173 = arith.mulf %172, %172 : vector<16x32xf32>
      %cst_64 = arith.constant dense<0.000000e+00> : vector<16xf32>
      %174 = vector.multi_reduction <add>, %173, %cst_64 [1] : vector<16x32xf32> to vector<16xf32>
      %175 = vector.shape_cast %174 : vector<16xf32> to vector<16x1xf32>
      %cst_65 = arith.constant 3.200000e+01 : f32
      %176 = vector.broadcast %cst_65 : f32 to vector<16x1xf32>
      %177 = arith.divf %175, %176 : vector<16x1xf32>
      %178 = vector.broadcast %170 : vector<16x1xf32> to vector<16x32xf32>
      %179 = arith.subf %164, %178 : vector<16x32xf32>
      %cst_66 = arith.constant 9.99999996E-13 : f32
      %180 = vector.broadcast %cst_66 : f32 to vector<16x1xf32>
      %181 = arith.addf %177, %180 : vector<16x1xf32>
      %182 = math.rsqrt %181 : vector<16x1xf32>
      %183 = vector.broadcast %182 : vector<16x1xf32> to vector<16x32xf32>
      %184 = arith.mulf %179, %183 : vector<16x32xf32>
      %185 = vector.broadcast %165 : vector<1x32xf32> to vector<16x32xf32>
      %186 = arith.mulf %184, %185 : vector<16x32xf32>
      %187 = vector.broadcast %166 : vector<1x32xf32> to vector<16x32xf32>
      %188 = arith.addf %186, %187 : vector<16x32xf32>
      %c0_67 = arith.constant 0 : index
      %c0_68 = arith.constant 0 : index
      %189 = vector.load %arg12[%c0_67, %c0_68] : memref<16x32xf32, #tpu.memory_space<vmem>>, vector<16x32xf32>
      tpu.vector_store %arg12[%c0_67, %c0_68], %188 {strides = array<i32>} : memref<16x32xf32, #tpu.memory_space<vmem>>, vector<16x32xf32>,
    } else {
    }
    %c0 = arith.constant 0 : index
    %c0_1 = arith.constant 0 : index
    %3 = vector.load %arg12[%c0, %c0_1] : memref<16x32xf32, #tpu.memory_space<vmem>>, vector<16x32xf32>
    %c0_2 = arith.constant 0 : index
    %c0_3 = arith.constant 0 : index
    %c0_4 = arith.constant 0 : index
    %4 = vector.load %arg6[%c0_2, %c0_3, %c0_4] : memref<1x8x128xf32, #tpu.memory_space<vmem>>, vector<1x8x128xf32>
    %5 = vector.shape_cast %4 : vector<1x8x128xf32> to vector<8x128xf32>
    %c0_5 = arith.constant 0 : index
    %c0_6 = arith.constant 0 : index
    %c0_7 = arith.constant 0 : index
    %6 = vector.load %arg7[%c0_5, %c0_6, %c0_7] : memref<1x32x96xbf16, #tpu.memory_space<vmem>>, vector<1x32x96xbf16>
    %7 = vector.shape_cast %6 : vector<1x32x96xbf16> to vector<32x96xbf16>
    %c0_8 = arith.constant 0 : index
    %c0_9 = arith.constant 0 : index
    %c0_10 = arith.constant 0 : index
    %8 = vector.load %arg8[%c0_8, %c0_9, %c0_10] : memref<1x32x32xbf16, #tpu.memory_space<vmem>>, vector<1x32x32xbf16>
    %9 = vector.shape_cast %8 : vector<1x32x32xbf16> to vector<32x32xbf16>
    %c0_11 = arith.constant 0 : index
    %c0_12 = arith.constant 0 : index
    %c0_13 = arith.constant 0 : index
    %10 = vector.load %arg9[%c0_11, %c0_12, %c0_13] : memref<1x32x64xbf16, #tpu.memory_space<vmem>>, vector<1x32x64xbf16>
    %11 = vector.shape_cast %10 : vector<1x32x64xbf16> to vector<32x64xbf16>
    %c0_14 = arith.constant 0 : index
    %c0_15 = arith.constant 0 : index
    %c0_16 = arith.constant 0 : index
    %12 = vector.load %arg10[%c0_14, %c0_15, %c0_16] : memref<1x64x32xbf16, #tpu.memory_space<vmem>>, vector<1x64x32xbf16>
    %13 = vector.shape_cast %12 : vector<1x64x32xbf16> to vector<64x32xbf16>
    %c0_17 = arith.constant 0 : index
    %c0_18 = arith.constant 0 : index
    %c0_19 = arith.constant 0 : index
    %14 = vector.load %arg4[%c0_17, %c0_18, %c0_19] : memref<2x8x8xf32, #tpu.memory_space<vmem>>, vector<2x8x8xf32>
    %15 = arith.truncf %3 : vector<16x32xf32> to vector<16x32xbf16>
    %cst = arith.constant dense<0.000000e+00> : vector<16x96xf32>
    %16 = tpu.matmul %15, %7, %cst {dimension_numbers = #tpu.dot_dimension_numbers<[1], [0], [0], [1], [0, 0, 1, 1], [], []>} : vector<16x32xbf16>, vector<32x96xbf16>, vector<16x96xf32> -> vector<16x96xf32>
    %17 = vector.extract_strided_slice %5 {offsets = [0, 0], sizes = [1, 96], strides = [1, 1]} : vector<8x128xf32> to vector<1x96xf32>
    %18 = vector.broadcast %17 : vector<1x96xf32> to vector<16x96xf32>
    %19 = arith.addf %16, %18 : vector<16x96xf32>
    %20 = vector.shape_cast %19 : vector<16x96xf32> to vector<2x8x96xf32>
    %cst_20 = arith.constant 0.000000e+00 : f32
    %21 = vector.broadcast %cst_20 : f32 to vector<16x32xf32>
    %22 = vector.extract_strided_slice %20 {offsets = [0, 0, 0], sizes = [2, 8, 16], strides = [1, 1, 1]} : vector<2x8x96xf32> to vector<2x8x16xf32>
    %23 = arith.truncf %22 : vector<2x8x16xf32> to vector<2x8x16xbf16>
    %24 = vector.extract_strided_slice %20 {offsets = [0, 0, 32], sizes = [2, 8, 16], strides = [1, 1, 1]} : vector<2x8x96xf32> to vector<2x8x16xf32>
    %25 = arith.truncf %24 : vector<2x8x16xf32> to vector<2x8x16xbf16>
    %26 = vector.extract_strided_slice %20 {offsets = [0, 0, 64], sizes = [2, 8, 16], strides = [1, 1, 1]} : vector<2x8x96xf32> to vector<2x8x16xf32>
    %27 = arith.truncf %26 : vector<2x8x16xf32> to vector<2x8x16xbf16>
    %cst_21 = arith.constant dense<0.000000e+00> : vector<2x8x8xf32>
    %28 = tpu.matmul %23, %25, %cst_21 {dimension_numbers = #tpu.dot_dimension_numbers<[2], [2], [1], [1], [0, 0, 0, 1, 1, 1], [0], [0]>} : vector<2x8x16xbf16>, vector<2x8x16xbf16>, vector<2x8x8xf32> -> vector<2x8x8xf32>
    %cst_22 = arith.constant 2.500000e-01 : f32
    %29 = vector.broadcast %cst_22 : f32 to vector<2x8x8xf32>
    %30 = arith.mulf %28, %29 : vector<2x8x8xf32>
    %31 = arith.addf %30, %14 : vector<2x8x8xf32>
    %cst_23 = arith.constant dense<0xFF800000> : vector<2x8xf32>
    %32 = vector.multi_reduction <maximumf>, %31, %cst_23 [2] : vector<2x8x8xf32> to vector<2x8xf32>
    %33 = vector.shape_cast %32 : vector<2x8xf32> to vector<2x8x1xf32>
    %34 = vector.broadcast %33 : vector<2x8x1xf32> to vector<2x8x8xf32>
    %35 = arith.subf %31, %34 : vector<2x8x8xf32>
    %36 = math.exp %35 : vector<2x8x8xf32>
    %cst_24 = arith.constant dense<0.000000e+00> : vector<2x8xf32>
    %37 = vector.multi_reduction <add>, %36, %cst_24 [2] : vector<2x8x8xf32> to vector<2x8xf32>
    %38 = vector.shape_cast %37 : vector<2x8xf32> to vector<2x8x1xf32>
    %39 = tpu.reciprocal %38 {approx = true} : vector<2x8x1xf32> -> vector<2x8x1xf32>
    %40 = vector.broadcast %39 : vector<2x8x1xf32> to vector<2x8x8xf32>
    %41 = arith.mulf %36, %40 : vector<2x8x8xf32>
    %42 = arith.truncf %41 : vector<2x8x8xf32> to vector<2x8x8xbf16>
    %cst_25 = arith.constant dense<0.000000e+00> : vector<2x8x16xf32>
    %43 = tpu.matmul %42, %27, %cst_25 {dimension_numbers = #tpu.dot_dimension_numbers<[2], [1], [1], [2], [0, 0, 0, 1, 1, 2], [0], [0]>} : vector<2x8x8xbf16>, vector<2x8x16xbf16>, vector<2x8x16xf32> -> vector<2x8x16xf32>
    %44 = vector.shape_cast %43 : vector<2x8x16xf32> to vector<16x16xf32>
    %45 = arith.truncf %44 : vector<16x16xf32> to vector<16x16xbf16>
    %46 = vector.extract_strided_slice %9 {offsets = [0, 0], sizes = [16, 32], strides = [1, 1]} : vector<32x32xbf16> to vector<16x32xbf16>
    %cst_26 = arith.constant dense<0.000000e+00> : vector<16x32xf32>
    %47 = tpu.matmul %45, %46, %cst_26 {dimension_numbers = #tpu.dot_dimension_numbers<[1], [0], [0], [1], [0, 0, 1, 1], [], []>} : vector<16x16xbf16>, vector<16x32xbf16>, vector<16x32xf32> -> vector<16x32xf32>
    %48 = arith.addf %21, %47 : vector<16x32xf32>
    %49 = vector.extract_strided_slice %20 {offsets = [0, 0, 16], sizes = [2, 8, 16], strides = [1, 1, 1]} : vector<2x8x96xf32> to vector<2x8x16xf32>
    %50 = arith.truncf %49 : vector<2x8x16xf32> to vector<2x8x16xbf16>
    %51 = vector.extract_strided_slice %20 {offsets = [0, 0, 48], sizes = [2, 8, 16], strides = [1, 1, 1]} : vector<2x8x96xf32> to vector<2x8x16xf32>
    %52 = arith.truncf %51 : vector<2x8x16xf32> to vector<2x8x16xbf16>
    %53 = vector.extract_strided_slice %20 {offsets = [0, 0, 80], sizes = [2, 8, 16], strides = [1, 1, 1]} : vector<2x8x96xf32> to vector<2x8x16xf32>
    %54 = arith.truncf %53 : vector<2x8x16xf32> to vector<2x8x16xbf16>
    %cst_27 = arith.constant dense<0.000000e+00> : vector<2x8x8xf32>
    %55 = tpu.matmul %50, %52, %cst_27 {dimension_numbers = #tpu.dot_dimension_numbers<[2], [2], [1], [1], [0, 0, 0, 1, 1, 1], [0], [0]>} : vector<2x8x16xbf16>, vector<2x8x16xbf16>, vector<2x8x8xf32> -> vector<2x8x8xf32>
    %cst_28 = arith.constant 2.500000e-01 : f32
    %56 = vector.broadcast %cst_28 : f32 to vector<2x8x8xf32>
    %57 = arith.mulf %55, %56 : vector<2x8x8xf32>
    %58 = arith.addf %57, %14 : vector<2x8x8xf32>
    %cst_29 = arith.constant dense<0xFF800000> : vector<2x8xf32>
    %59 = vector.multi_reduction <maximumf>, %58, %cst_29 [2] : vector<2x8x8xf32> to vector<2x8xf32>
    %60 = vector.shape_cast %59 : vector<2x8xf32> to vector<2x8x1xf32>
    %61 = vector.broadcast %60 : vector<2x8x1xf32> to vector<2x8x8xf32>
    %62 = arith.subf %58, %61 : vector<2x8x8xf32>
    %63 = math.exp %62 : vector<2x8x8xf32>
    %cst_30 = arith.constant dense<0.000000e+00> : vector<2x8xf32>
    %64 = vector.multi_reduction <add>, %63, %cst_30 [2] : vector<2x8x8xf32> to vector<2x8xf32>
    %65 = vector.shape_cast %64 : vector<2x8xf32> to vector<2x8x1xf32>
    %66 = tpu.reciprocal %65 {approx = true} : vector<2x8x1xf32> -> vector<2x8x1xf32>
    %67 = vector.broadcast %66 : vector<2x8x1xf32> to vector<2x8x8xf32>
    %68 = arith.mulf %63, %67 : vector<2x8x8xf32>
    %69 = arith.truncf %68 : vector<2x8x8xf32> to vector<2x8x8xbf16>
    %cst_31 = arith.constant dense<0.000000e+00> : vector<2x8x16xf32>
    %70 = tpu.matmul %69, %54, %cst_31 {dimension_numbers = #tpu.dot_dimension_numbers<[2], [1], [1], [2], [0, 0, 0, 1, 1, 2], [0], [0]>} : vector<2x8x8xbf16>, vector<2x8x16xbf16>, vector<2x8x16xf32> -> vector<2x8x16xf32>
    %71 = vector.shape_cast %70 : vector<2x8x16xf32> to vector<16x16xf32>
    %72 = arith.truncf %71 : vector<16x16xf32> to vector<16x16xbf16>
    %73 = vector.extract_strided_slice %9 {offsets = [16, 0], sizes = [16, 32], strides = [1, 1]} : vector<32x32xbf16> to vector<16x32xbf16>
    %cst_32 = arith.constant dense<0.000000e+00> : vector<16x32xf32>
    %74 = tpu.matmul %72, %73, %cst_32 {dimension_numbers = #tpu.dot_dimension_numbers<[1], [0], [0], [1], [0, 0, 1, 1], [], []>} : vector<16x16xbf16>, vector<16x32xbf16>, vector<16x32xf32> -> vector<16x32xf32>
    %75 = arith.addf %48, %74 : vector<16x32xf32>
    %76 = vector.extract_strided_slice %5 {offsets = [1, 0], sizes = [1, 32], strides = [1, 1]} : vector<8x128xf32> to vector<1x32xf32>
    %77 = vector.broadcast %76 : vector<1x32xf32> to vector<16x32xf32>
    %78 = arith.addf %75, %77 : vector<16x32xf32>
    %79 = arith.addf %3, %78 : vector<16x32xf32>
    %80 = vector.extract_strided_slice %5 {offsets = [2, 0], sizes = [1, 32], strides = [1, 1]} : vector<8x128xf32> to vector<1x32xf32>
    %81 = vector.extract_strided_slice %5 {offsets = [3, 0], sizes = [1, 32], strides = [1, 1]} : vector<8x128xf32> to vector<1x32xf32>
    %cst_33 = arith.constant dense<0.000000e+00> : vector<16xf32>
    %82 = vector.multi_reduction <add>, %79, %cst_33 [1] : vector<16x32xf32> to vector<16xf32>
    %83 = vector.shape_cast %82 : vector<16xf32> to vector<16x1xf32>
    %cst_34 = arith.constant 3.200000e+01 : f32
    %84 = vector.broadcast %cst_34 : f32 to vector<16x1xf32>
    %85 = arith.divf %83, %84 : vector<16x1xf32>
    %86 = vector.broadcast %85 : vector<16x1xf32> to vector<16x32xf32>
    %87 = arith.subf %79, %86 : vector<16x32xf32>
    %88 = arith.mulf %87, %87 : vector<16x32xf32>
    %cst_35 = arith.constant dense<0.000000e+00> : vector<16xf32>
    %89 = vector.multi_reduction <add>, %88, %cst_35 [1] : vector<16x32xf32> to vector<16xf32>
    %90 = vector.shape_cast %89 : vector<16xf32> to vector<16x1xf32>
    %cst_36 = arith.constant 3.200000e+01 : f32
    %91 = vector.broadcast %cst_36 : f32 to vector<16x1xf32>
    %92 = arith.divf %90, %91 : vector<16x1xf32>
    %93 = vector.broadcast %85 : vector<16x1xf32> to vector<16x32xf32>
    %94 = arith.subf %79, %93 : vector<16x32xf32>
    %cst_37 = arith.constant 9.99999996E-13 : f32
    %95 = vector.broadcast %cst_37 : f32 to vector<16x1xf32>
    %96 = arith.addf %92, %95 : vector<16x1xf32>
    %97 = math.rsqrt %96 : vector<16x1xf32>
    %98 = vector.broadcast %97 : vector<16x1xf32> to vector<16x32xf32>
    %99 = arith.mulf %94, %98 : vector<16x32xf32>
    %100 = vector.broadcast %80 : vector<1x32xf32> to vector<16x32xf32>
    %101 = arith.mulf %99, %100 : vector<16x32xf32>
    %102 = vector.broadcast %81 : vector<1x32xf32> to vector<16x32xf32>
    %103 = arith.addf %101, %102 : vector<16x32xf32>
    %104 = arith.truncf %103 : vector<16x32xf32> to vector<16x32xbf16>
    %cst_38 = arith.constant dense<0.000000e+00> : vector<16x64xf32>
    %105 = tpu.matmul %104, %11, %cst_38 {dimension_numbers = #tpu.dot_dimension_numbers<[1], [0], [0], [1], [0, 0, 1, 1], [], []>} : vector<16x32xbf16>, vector<32x64xbf16>, vector<16x64xf32> -> vector<16x64xf32>
    %106 = vector.extract_strided_slice %5 {offsets = [4, 0], sizes = [1, 64], strides = [1, 1]} : vector<8x128xf32> to vector<1x64xf32>
    %107 = vector.broadcast %106 : vector<1x64xf32> to vector<16x64xf32>
    %108 = arith.addf %105, %107 : vector<16x64xf32>
    %109 = arith.mulf %108, %108 : vector<16x64xf32>
    %110 = arith.mulf %108, %109 : vector<16x64xf32>
    %cst_39 = arith.constant 4.471500e-02 : f32
    %111 = vector.broadcast %cst_39 : f32 to vector<16x64xf32>
    %112 = arith.mulf %111, %110 : vector<16x64xf32>
    %113 = arith.addf %108, %112 : vector<16x64xf32>
    %cst_40 = arith.constant 0.797884583 : f32
    %114 = vector.broadcast %cst_40 : f32 to vector<16x64xf32>
    %115 = arith.mulf %114, %113 : vector<16x64xf32>
    %116 = math.tanh %115 : vector<16x64xf32>
    %cst_41 = arith.constant 1.000000e+00 : f32
    %117 = vector.broadcast %cst_41 : f32 to vector<16x64xf32>
    %118 = arith.addf %117, %116 : vector<16x64xf32>
    %cst_42 = arith.constant 5.000000e-01 : f32
    %119 = vector.broadcast %cst_42 : f32 to vector<16x64xf32>
    %120 = arith.mulf %119, %118 : vector<16x64xf32>
    %121 = arith.mulf %108, %120 : vector<16x64xf32>
    %122 = arith.truncf %121 : vector<16x64xf32> to vector<16x64xbf16>
    %cst_43 = arith.constant dense<0.000000e+00> : vector<16x32xf32>
    %123 = tpu.matmul %122, %13, %cst_43 {dimension_numbers = #tpu.dot_dimension_numbers<[1], [0], [0], [1], [0, 0, 1, 1], [], []>} : vector<16x64xbf16>, vector<64x32xbf16>, vector<16x32xf32> -> vector<16x32xf32>
    %124 = vector.extract_strided_slice %5 {offsets = [5, 0], sizes = [1, 32], strides = [1, 1]} : vector<8x128xf32> to vector<1x32xf32>
    %125 = vector.broadcast %124 : vector<1x32xf32> to vector<16x32xf32>
    %126 = arith.addf %123, %125 : vector<16x32xf32>
    %127 = arith.addf %103, %126 : vector<16x32xf32>
    %128 = vector.extract_strided_slice %5 {offsets = [6, 0], sizes = [1, 32], strides = [1, 1]} : vector<8x128xf32> to vector<1x32xf32>
    %129 = vector.extract_strided_slice %5 {offsets = [7, 0], sizes = [1, 32], strides = [1, 1]} : vector<8x128xf32> to vector<1x32xf32>
    %cst_44 = arith.constant dense<0.000000e+00> : vector<16xf32>
    %130 = vector.multi_reduction <add>, %127, %cst_44 [1] : vector<16x32xf32> to vector<16xf32>
    %131 = vector.shape_cast %130 : vector<16xf32> to vector<16x1xf32>
    %cst_45 = arith.constant 3.200000e+01 : f32
    %132 = vector.broadcast %cst_45 : f32 to vector<16x1xf32>
    %133 = arith.divf %131, %132 : vector<16x1xf32>
    %134 = vector.broadcast %133 : vector<16x1xf32> to vector<16x32xf32>
    %135 = arith.subf %127, %134 : vector<16x32xf32>
    %136 = arith.mulf %135, %135 : vector<16x32xf32>
    %cst_46 = arith.constant dense<0.000000e+00> : vector<16xf32>
    %137 = vector.multi_reduction <add>, %136, %cst_46 [1] : vector<16x32xf32> to vector<16xf32>
    %138 = vector.shape_cast %137 : vector<16xf32> to vector<16x1xf32>
    %cst_47 = arith.constant 3.200000e+01 : f32
    %139 = vector.broadcast %cst_47 : f32 to vector<16x1xf32>
    %140 = arith.divf %138, %139 : vector<16x1xf32>
    %141 = vector.broadcast %133 : vector<16x1xf32> to vector<16x32xf32>
    %142 = arith.subf %127, %141 : vector<16x32xf32>
    %cst_48 = arith.constant 9.99999996E-13 : f32
    %143 = vector.broadcast %cst_48 : f32 to vector<16x1xf32>
    %144 = arith.addf %140, %143 : vector<16x1xf32>
    %145 = math.rsqrt %144 : vector<16x1xf32>
    %146 = vector.broadcast %145 : vector<16x1xf32> to vector<16x32xf32>
    %147 = arith.mulf %142, %146 : vector<16x32xf32>
    %148 = vector.broadcast %128 : vector<1x32xf32> to vector<16x32xf32>
    %149 = arith.mulf %147, %148 : vector<16x32xf32>
    %150 = vector.broadcast %129 : vector<1x32xf32> to vector<16x32xf32>
    %151 = arith.addf %149, %150 : vector<16x32xf32>
    %c0_49 = arith.constant 0 : index
    %c0_50 = arith.constant 0 : index
    %152 = vector.load %arg12[%c0_49, %c0_50] : memref<16x32xf32, #tpu.memory_space<vmem>>, vector<16x32xf32>
    tpu.vector_store %arg12[%c0_49, %c0_50], %151 {strides = array<i32>} : memref<16x32xf32, #tpu.memory_space<vmem>>, vector<16x32xf32>,
    %c1_i32 = arith.constant 1 : i32
    %153 = arith.cmpi eq, %arg0, %c1_i32 : i32
    %154 = arith.extui %153 : i1 to i32
    %c0_i32_51 = arith.constant 0 : i32
    %155 = arith.cmpi ne, %154, %c0_i32_51 : i32
    scf.if %155 {
      %156 = vector.extract_strided_slice %151 {offsets = [0, 0], sizes = [1, 32], strides = [1, 1]} : vector<16x32xf32> to vector<1x32xf32>
      %157 = vector.extract_strided_slice %151 {offsets = [8, 0], sizes = [1, 32], strides = [1, 1]} : vector<16x32xf32> to vector<1x32xf32>
      %158 = tpu.concatenate %156, %157 in 0 : vector<1x32xf32>, vector<1x32xf32> -> vector<2x32xf32>
      %c0_52 = arith.constant 0 : index
      %c0_53 = arith.constant 0 : index
      %159 = vector.load %arg11[%c0_52, %c0_53] : memref<2x32xf32, #tpu.memory_space<vmem>>, vector<2x32xf32>
      tpu.vector_store %arg11[%c0_52, %c0_53], %158 {strides = array<i32>} : memref<2x32xf32, #tpu.memory_space<vmem>>, vector<2x32xf32>,
    } else {
    }
    return
  }
  func.func @transform_0(%arg0: i32) -> (i32, i32) {
    %c0_i32 = arith.constant 0 : i32
    %c0_i32_0 = arith.constant 0 : i32
    %c0_i32_1 = arith.constant 0 : i32
    return %c0_i32, %c0_i32_0 : i32, i32
  }
  func.func @transform_1(%arg0: i32) -> (i32, i32) {
    %c0_i32 = arith.constant 0 : i32
    %c0_i32_0 = arith.constant 0 : i32
    %c0_i32_1 = arith.constant 0 : i32
    return %c0_i32, %c0_i32_0 : i32, i32
  }
  func.func @transform_2(%arg0: i32) -> (i32, i32) {
    %c0_i32 = arith.constant 0 : i32
    %c0_i32_0 = arith.constant 0 : i32
    %c0_i32_1 = arith.constant 0 : i32
    return %c0_i32, %c0_i32_0 : i32, i32
  }
  func.func @transform_3(%arg0: i32) -> (i32, i32, i32) {
    %c0_i32 = arith.constant 0 : i32
    %c0_i32_0 = arith.constant 0 : i32
    %c0_i32_1 = arith.constant 0 : i32
    %c0_i32_2 = arith.constant 0 : i32
    return %c0_i32, %c0_i32_0, %c0_i32_1 : i32, i32, i32
  }
  func.func @transform_4(%arg0: i32) -> (i32, i32) {
    %c0_i32 = arith.constant 0 : i32
    %c0_i32_0 = arith.constant 0 : i32
    %c0_i32_1 = arith.constant 0 : i32
    return %c0_i32, %c0_i32_0 : i32, i32
  }
  func.func @transform_5(%arg0: i32) -> (i32, i32, i32) {
    %c0_i32 = arith.constant 0 : i32
    %c0_i32_0 = arith.constant 0 : i32
    %c0_i32_1 = arith.constant 0 : i32
    return %arg0, %c0_i32, %c0_i32_0 : i32, i32, i32
  }
  func.func @transform_6(%arg0: i32) -> (i32, i32, i32) {
    %c0_i32 = arith.constant 0 : i32
    %c0_i32_0 = arith.constant 0 : i32
    %c0_i32_1 = arith.constant 0 : i32
    return %arg0, %c0_i32, %c0_i32_0 : i32, i32, i32
  }
  func.func @transform_7(%arg0: i32) -> (i32, i32, i32) {
    %c0_i32 = arith.constant 0 : i32
    %c0_i32_0 = arith.constant 0 : i32
    %c0_i32_1 = arith.constant 0 : i32
    return %arg0, %c0_i32, %c0_i32_0 : i32, i32, i32
  }
  func.func @transform_8(%arg0: i32) -> (i32, i32, i32) {
    %c0_i32 = arith.constant 0 : i32
    %c0_i32_0 = arith.constant 0 : i32
    %c0_i32_1 = arith.constant 0 : i32
    return %arg0, %c0_i32, %c0_i32_0 : i32, i32, i32
  }
  func.func @transform_9(%arg0: i32) -> (i32, i32, i32) {
    %c0_i32 = arith.constant 0 : i32
    %c0_i32_0 = arith.constant 0 : i32
    %c0_i32_1 = arith.constant 0 : i32
    return %arg0, %c0_i32, %c0_i32_0 : i32, i32, i32
  }
  func.func @transform_10(%arg0: i32) -> (i32, i32) {
    %c0_i32 = arith.constant 0 : i32
    %c0_i32_0 = arith.constant 0 : i32
    %c0_i32_1 = arith.constant 0 : i32
    return %c0_i32, %c0_i32_0 : i32, i32
  }
}

</mosaic_0001>

<llo_original>
// kernel: eq.1
$region0: #{eq.1}
  %s0 = inlined_call_operand.hbm [shape: s32[2,8], index: 0, kind: input, shape index: {}]
  %s1 = inlined_call_operand.vmem [shape: s32[16], index: 1, kind: output, shape index: {}]
  $region1: #{eq.1} parent=0
    #allocation0 [shape = 'u8[1024]{0}', space=vmem, size = 0x400, scoped, tag = 'operand span for operand 0']
    #allocation1 [shape = 's32[1]{0}', space=sflag, size = 0x4, scoped, tag = 'scoped memory for eq.1']
    #allocation2 [shape = 'u8[4096]{0}', space=vmem, size = 0x1000, scoped, tag = 'scoped mem for output reshape']
    #allocation3 [shape = 'u8[4096]{0}', space=vmem, size = 0x1000, scoped, tag = 'scoped mem for input reshape']
    %2 = vsyncpa [#allocation1], 0
    %4 = vsyncadd [#allocation1], 0
    %s6 = sshll.u32 %s0, 4
    %s7 = int_to_ptr.hbm [resolvable:$true] %s6
    %s8 = sshll.u32 [#allocation0], 4
    %s9 = int_to_ptr.vmem [resolvable:$true] %s8
    %11 = dma.hbm_to_vmem [thread:$0]  %s7, 32, %s9, [#allocation1]
    %13 = dma.done [#allocation1], 32
    %s15 = ssub.s32 4, 1
    %v16 = vld [vmem:[#allocation0] sm:%s15]
    %17 = vst [vmem:[#allocation3] sm:%s15] %v16
    %v18 = vld [vmem:[#allocation3] sm:$0x1]
    %vm19 = vcmask 64512
    %20 = vst.msk [vmem:[#allocation2] sm:$0x1] %vm19, %v18
    %s21 = scalar_lea.vmem [#allocation3], 1
    %v22 = vld [vmem:[%s21] sm:$0x1]
    %23 = vrot.lane.b32.xlu0 %v22, 8
    %v24 = vpop.permute.xlu0 %23
    %vm25 = vcmask 130112
    %26 = vst.msk [vmem:[#allocation2] sm:$0x1] %vm25, %v24
    %s28 = ssub.s32 2, 1
    %v29 = vld [vmem:[#allocation2] sm:%s28]
    %s31 = ssub.s32 2, 1
    %32 = vst [vmem:[%s1] sm:%s31] %v29
    %33 = vsyncpa [#allocation1], 1

// kernel: feature_extractor.1
$region0: #{feature_extractor.1}
  #allocation0 [shape = 'u32[]', space=smem, size = 0x4, offset = 0x4, fixed_abs, tag = 'smem constant byte address 0x4 - core index']
  #allocation1 [shape = 'u32[72,128]{1,0:T(1,128)}', space=vmem, size = 0x9000, scoped, tag = 'internal scratch']
  #allocation2 [shape = 'f32[16,32]{1,0:T(8,128)}', space=vmem, size = 0x2000, scoped, tag = 'scratch operand']
  %s0 = inlined_call_operand.vmem [shape: f32[16,128], index: 0, kind: input, shape index: {}]
  %s1 = inlined_call_operand.vmem [shape: f32[128,32], index: 1, kind: input, shape index: {}]
  %s2 = inlined_call_operand.vmem [shape: f32[8,32], index: 2, kind: input, shape index: {}]
  %s3 = inlined_call_operand.vmem [shape: f32[2,8,8], index: 3, kind: input, shape index: {}]
  %s4 = inlined_call_operand.vmem [shape: f32[2,128], index: 4, kind: input, shape index: {}]
  %s5 = inlined_call_operand.vmem [shape: f32[2,8,128], index: 5, kind: input, shape index: {}]
  %s6 = inlined_call_operand.vmem [shape: bf16[2,32,96], index: 6, kind: input, shape index: {}]
  %s7 = inlined_call_operand.vmem [shape: bf16[2,32,32], index: 7, kind: input, shape index: {}]
  %s8 = inlined_call_operand.vmem [shape: bf16[2,32,64], index: 8, kind: input, shape index: {}]
  %s9 = inlined_call_operand.vmem [shape: bf16[2,64,32], index: 9, kind: input, shape index: {}]
  %s10 = inlined_call_operand.hbm [shape: f32[2,32], index: 10, kind: output, shape index: {}]
  %s11 = sld [smem:[#allocation0]]
  $region81: #{feature_extractor.1} parent=0
    _
  %s13 = ssub.s32 1, %s11
  %s14 = scalar_select 0, %s13, %s11
  $region1: #{feature_extractor.1} parent=0
    #allocation3 [shape = 'u8[1024]{0}', space=vmem, size = 0x400, scoped, tag = 'output window, operand 0, single buffered']
    #allocation4 [shape = 's32[2]{0}', space=sflag, size = 0x8, scoped, tag = 'scoped memory for feature_extractor.1']
    %15 = vsyncpa [#allocation4], 0
    loop: start=0, step=1, limit=4
    $region2: #{feature_extractor.1} parent=1 // loop_pre_header
      _
    $region3: #{feature_extractor.1} parent=1 // loop_header
      %s17 = sphi 0, %s21
      %p18 = scmp.ge.s32.totalorder %s17, 4
      %s25 = sphi 0, %s25
      %s27 = sphi 0, %s25
      %s28 = sphi 0, %s27
      %s42 = sphi 0, %s28
      %s46 = sphi 0, %s46
      %s48 = sphi 0, %s46
      %s49 = sphi 0, %s48
      %s63 = sphi 0, %s49
      %s67 = sphi 0, %s67
      %s69 = sphi 0, %s67
      %s70 = sphi 0, %s69
      %s84 = sphi 0, %s70
      %s88 = sphi 0, %s88
      %s90 = sphi 0, %s88
      %s91 = sphi 0, %s90
      %s105 = sphi 0, %s91
      %s109 = sphi 0, %s109
      %s111 = sphi 0, %s109
      %s112 = sphi 0, %s111
      %s126 = sphi 0, %s112
      %s132 = sphi 0, %s134
      %s135 = sphi 0, %s132
      %s136 = sphi 0, %s135
      %s152 = sphi 0, %s136
      %s158 = sphi 0, %s160
      %s161 = sphi 0, %s158
      %s162 = sphi 0, %s161
      %s178 = sphi 0, %s162
      %s184 = sphi 0, %s186
      %s187 = sphi 0, %s184
      %s188 = sphi 0, %s187
      %s204 = sphi 0, %s188
      %s210 = sphi 0, %s212
      %s213 = sphi 0, %s210
      %s214 = sphi 0, %s213
      %s230 = sphi 0, %s214
      %s236 = sphi 0, %s238
      %s239 = sphi 0, %s236
      %s240 = sphi 0, %s239
      %s256 = sphi 0, %s240
      %s260 = sphi 0, %s260
      %s262 = sphi 0, %s260
      %s263 = sphi 0, %s262
      %s277 = sphi 0, %s263
    $region4: #{feature_extractor.1} parent=1 // loop_header_branch
      %20 = sbr.rel (%p18) target = $region8
    $region5: #{feature_extractor.1} parent=1 // loop_body
      %s22 = ssub.s32 %s17, 1
      %s23 = ssub.s32 %s17, 2
      %s24 = sadd.s32 %s17, 1
      %s26 = sadd.s32 %s25, 1
      %p29 = scmp.eq.s32.totalorder %s17, 1
      %p30 = scmp.ne.s32.totalorder %s25, %s27
      %p31 = scmp.eq.s32.totalorder %s17, 0
      %p32 = por %p30, %p31
      %p33 = scmp.ne.s32.totalorder %s25, %s27
      %p34 = scmp.eq.s32.totalorder %s22, 1
      %p35 = por %p33, %p34
      %p36 = scmp.ne.s32.totalorder %s27, %s28
      %p37 = scmp.eq.s32.totalorder %s22, 0
      %p38 = por %p36, %p37
      %p39 = scmp.ne.s32.totalorder %s27, %s28
      %p40 = scmp.eq.s32.totalorder %s23, 1
      %p41 = por %p39, %p40
      %p43 = scmp.ne.s32.totalorder %s28, %s42
      %p44 = scmp.eq.s32.totalorder %s23, 0
      %p45 = por %p43, %p44
      %s47 = sadd.s32 %s46, 1
      %p50 = scmp.eq.s32.totalorder %s17, 1
      %p51 = scmp.ne.s32.totalorder %s46, %s48
      %p52 = scmp.eq.s32.totalorder %s17, 0
      %p53 = por %p51, %p52
      %p54 = scmp.ne.s32.totalorder %s46, %s48
      %p55 = scmp.eq.s32.totalorder %s22, 1
      %p56 = por %p54, %p55
      %p57 = scmp.ne.s32.totalorder %s48, %s49
      %p58 = scmp.eq.s32.totalorder %s22, 0
      %p59 = por %p57, %p58
      %p60 = scmp.ne.s32.totalorder %s48, %s49
      %p61 = scmp.eq.s32.totalorder %s23, 1
      %p62 = por %p60, %p61
      %p64 = scmp.ne.s32.totalorder %s49, %s63
      %p65 = scmp.eq.s32.totalorder %s23, 0
      %p66 = por %p64, %p65
      %s68 = sadd.s32 %s67, 1
      %p71 = scmp.eq.s32.totalorder %s17, 1
      %p72 = scmp.ne.s32.totalorder %s67, %s69
      %p73 = scmp.eq.s32.totalorder %s17, 0
      %p74 = por %p72, %p73
      %p75 = scmp.ne.s32.totalorder %s67, %s69
      %p76 = scmp.eq.s32.totalorder %s22, 1
      %p77 = por %p75, %p76
      %p78 = scmp.ne.s32.totalorder %s69, %s70
      %p79 = scmp.eq.s32.totalorder %s22, 0
      %p80 = por %p78, %p79
      %p81 = scmp.ne.s32.totalorder %s69, %s70
      %p82 = scmp.eq.s32.totalorder %s23, 1
      %p83 = por %p81, %p82
      %p85 = scmp.ne.s32.totalorder %s70, %s84
      %p86 = scmp.eq.s32.totalorder %s23, 0
      %p87 = por %p85, %p86
      %s89 = sadd.s32 %s88, 1
      %p92 = scmp.eq.s32.totalorder %s17, 1
      %p93 = scmp.ne.s32.totalorder %s88, %s90
      %p94 = scmp.eq.s32.totalorder %s17, 0
      %p95 = por %p93, %p94
      %p96 = scmp.ne.s32.totalorder %s88, %s90
      %p97 = scmp.eq.s32.totalorder %s22, 1
      %p98 = por %p96, %p97
      %p99 = scmp.ne.s32.totalorder %s90, %s91
      %p100 = scmp.eq.s32.totalorder %s22, 0
      %p101 = por %p99, %p100
      %p102 = scmp.ne.s32.totalorder %s90, %s91
      %p103 = scmp.eq.s32.totalorder %s23, 1
      %p104 = por %p102, %p103
      %p106 = scmp.ne.s32.totalorder %s91, %s105
      %p107 = scmp.eq.s32.totalorder %s23, 0
      %p108 = por %p106, %p107
      %s110 = sadd.s32 %s109, 1
      %p113 = scmp.eq.s32.totalorder %s17, 1
      %p114 = scmp.ne.s32.totalorder %s109, %s111
      %p115 = scmp.eq.s32.totalorder %s17, 0
      %p116 = por %p114, %p115
      %p117 = scmp.ne.s32.totalorder %s109, %s111
      %p118 = scmp.eq.s32.totalorder %s22, 1
      %p119 = por %p117, %p118
      %p120 = scmp.ne.s32.totalorder %s111, %s112
      %p121 = scmp.eq.s32.totalorder %s22, 0
      %p122 = por %p120, %p121
      %p123 = scmp.ne.s32.totalorder %s111, %s112
      %p124 = scmp.eq.s32.totalorder %s23, 1
      %p125 = por %p123, %p124
      %p127 = scmp.ne.s32.totalorder %s112, %s126
      %p128 = scmp.eq.s32.totalorder %s23, 0
      %p129 = por %p127, %p128
      %s130 = ssub.s32 %s17, %s24
      %p131 = scmp.eq.s32.totalorder %s130, 0
      %s133 = sadd.s32 %s132, 1
      %s134 = scalar_select %p131, %s132, %s133
      %p137 = pneg %p131
      %p138 = scmp.eq.s32.totalorder %s17, 1
      %p139 = por %p137, %p138
      %p140 = scmp.ne.s32.totalorder %s132, %s135
      %p141 = scmp.eq.s32.totalorder %s17, 0
      %p142 = por %p140, %p141
      %p143 = scmp.ne.s32.totalorder %s132, %s135
      %p144 = scmp.eq.s32.totalorder %s22, 1
      %p145 = por %p143, %p144
      %p146 = scmp.ne.s32.totalorder %s135, %s136
      %p147 = scmp.eq.s32.totalorder %s22, 0
      %p148 = por %p146, %p147
      %p149 = scmp.ne.s32.totalorder %s135, %s136
      %p150 = scmp.eq.s32.totalorder %s23, 1
      %p151 = por %p149, %p150
      %p153 = scmp.ne.s32.totalorder %s136, %s152
      %p154 = scmp.eq.s32.totalorder %s23, 0
      %p155 = por %p153, %p154
      %s156 = ssub.s32 %s17, %s24
      %p157 = scmp.eq.s32.totalorder %s156, 0
      %s159 = sadd.s32 %s158, 1
      %s160 = scalar_select %p157, %s158, %s159
      %p163 = pneg %p157
      %p164 = scmp.eq.s32.totalorder %s17, 1
      %p165 = por %p163, %p164
      %p166 = scmp.ne.s32.totalorder %s158, %s161
      %p167 = scmp.eq.s32.totalorder %s17, 0
      %p168 = por %p166, %p167
      %p169 = scmp.ne.s32.totalorder %s158, %s161
      %p170 = scmp.eq.s32.totalorder %s22, 1
      %p171 = por %p169, %p170
      %p172 = scmp.ne.s32.totalorder %s161, %s162
      %p173 = scmp.eq.s32.totalorder %s22, 0
      %p174 = por %p172, %p173
      %p175 = scmp.ne.s32.totalorder %s161, %s162
      %p176 = scmp.eq.s32.totalorder %s23, 1
      %p177 = por %p175, %p176
      %p179 = scmp.ne.s32.totalorder %s162, %s178
      %p180 = scmp.eq.s32.totalorder %s23, 0
      %p181 = por %p179, %p180
      %s182 = ssub.s32 %s17, %s24
      %p183 = scmp.eq.s32.totalorder %s182, 0
      %s185 = sadd.s32 %s184, 1
      %s186 = scalar_select %p183, %s184, %s185
      %p189 = pneg %p183
      %p190 = scmp.eq.s32.totalorder %s17, 1
      %p191 = por %p189, %p190
      %p192 = scmp.ne.s32.totalorder %s184, %s187
      %p193 = scmp.eq.s32.totalorder %s17, 0
      %p194 = por %p192, %p193
      %p195 = scmp.ne.s32.totalorder %s184, %s187
      %p196 = scmp.eq.s32.totalorder %s22, 1
      %p197 = por %p195, %p196
      %p198 = scmp.ne.s32.totalorder %s187, %s188
      %p199 = scmp.eq.s32.totalorder %s22, 0
      %p200 = por %p198, %p199
      %p201 = scmp.ne.s32.totalorder %s187, %s188
      %p202 = scmp.eq.s32.totalorder %s23, 1
      %p203 = por %p201, %p202
      %p205 = scmp.ne.s32.totalorder %s188, %s204
      %p206 = scmp.eq.s32.totalorder %s23, 0
      %p207 = por %p205, %p206
      %s208 = ssub.s32 %s17, %s24
      %p209 = scmp.eq.s32.totalorder %s208, 0
      %s211 = sadd.s32 %s210, 1
      %s212 = scalar_select %p209, %s210, %s211
      %p215 = pneg %p209
      %p216 = scmp.eq.s32.totalorder %s17, 1
      %p217 = por %p215, %p216
      %p218 = scmp.ne.s32.totalorder %s210, %s213
      %p219 = scmp.eq.s32.totalorder %s17, 0
      %p220 = por %p218, %p219
      %p221 = scmp.ne.s32.totalorder %s210, %s213
      %p222 = scmp.eq.s32.totalorder %s22, 1
      %p223 = por %p221, %p222
      %p224 = scmp.ne.s32.totalorder %s213, %s214
      %p225 = scmp.eq.s32.totalorder %s22, 0
      %p226 = por %p224, %p225
      %p227 = scmp.ne.s32.totalorder %s213, %s214
      %p228 = scmp.eq.s32.totalorder %s23, 1
      %p229 = por %p227, %p228
      %p231 = scmp.ne.s32.totalorder %s214, %s230
      %p232 = scmp.eq.s32.totalorder %s23, 0
      %p233 = por %p231, %p232
      %s234 = ssub.s32 %s17, %s24
      %p235 = scmp.eq.s32.totalorder %s234, 0
      %s237 = sadd.s32 %s236, 1
      %s238 = scalar_select %p235, %s236, %s237
      %p241 = pneg %p235
      %p242 = scmp.eq.s32.totalorder %s17, 1
      %p243 = por %p241, %p242
      %p244 = scmp.ne.s32.totalorder %s236, %s239
      %p245 = scmp.eq.s32.totalorder %s17, 0
      %p246 = por %p244, %p245
      %p247 = scmp.ne.s32.totalorder %s236, %s239
      %p248 = scmp.eq.s32.totalorder %s22, 1
      %p249 = por %p247, %p248
      %p250 = scmp.ne.s32.totalorder %s239, %s240
      %p251 = scmp.eq.s32.totalorder %s22, 0
      %p252 = por %p250, %p251
      %p253 = scmp.ne.s32.totalorder %s239, %s240
      %p254 = scmp.eq.s32.totalorder %s23, 1
      %p255 = por %p253, %p254
      %p257 = scmp.ne.s32.totalorder %s240, %s256
      %p258 = scmp.eq.s32.totalorder %s23, 0
      %p259 = por %p257, %p258
      %s261 = sadd.s32 %s260, 1
      %p264 = scmp.eq.s32.totalorder %s17, 1
      %p265 = scmp.ne.s32.totalorder %s260, %s262
      %p266 = scmp.eq.s32.totalorder %s17, 0
      %p267 = por %p265, %p266
      %p268 = scmp.ne.s32.totalorder %s260, %s262
      %p269 = scmp.eq.s32.totalorder %s22, 1
      %p270 = por %p268, %p269
      %p271 = scmp.ne.s32.totalorder %s262, %s263
      %p272 = scmp.eq.s32.totalorder %s22, 0
      %p273 = por %p271, %p272
      %p274 = scmp.ne.s32.totalorder %s262, %s263
      %p275 = scmp.eq.s32.totalorder %s23, 1
      %p276 = por %p274, %p275
      %p278 = scmp.ne.s32.totalorder %s263, %s277
      %p279 = scmp.eq.s32.totalorder %s23, 0
      %p280 = por %p278, %p279
      %p281 = scmp.le.s32.totalorder 1, %s17
      %p282 = scmp.lt.s32.totalorder %s17, 3
      %p283 = pnand %p281, %p282
      %p284 = pneg %p283
      // Predicated region
      $region9: #{feature_extractor.1} parent=5 // pred_check
        _
      $region10: #{feature_extractor.1} parent=5 // pred_check_branch
        %286 = sbr.rel (%p283) target = $region12
      $region11: #{feature_extractor.1} parent=5 // pred_region
        %s287 = ssub.s32 %s17, 1
        // Predicated region
        $region13: #{feature_extractor.1} parent=11 // pred_check
          %p288 = pneg %p38
        $region14: #{feature_extractor.1} parent=11 // pred_check_branch
          %290 = sbr.rel (%p288) target = $region16
        $region15: #{feature_extractor.1} parent=11 // pred_region
          _
        $region16: #{feature_extractor.1} parent=11 // pred_fallthru
          _
        // Predicated region
        $region17: #{feature_extractor.1} parent=11 // pred_check
          %p291 = pneg %p59
        $region18: #{feature_extractor.1} parent=11 // pred_check_branch
          %293 = sbr.rel (%p291) target = $region20
        $region19: #{feature_extractor.1} parent=11 // pred_region
          _
        $region20: #{feature_extractor.1} parent=11 // pred_fallthru
          _
        // Predicated region
        $region21: #{feature_extractor.1} parent=11 // pred_check
          %p294 = pneg %p80
        $region22: #{feature_extractor.1} parent=11 // pred_check_branch
          %296 = sbr.rel (%p294) target = $region24
        $region23: #{feature_extractor.1} parent=11 // pred_region
          _
        $region24: #{feature_extractor.1} parent=11 // pred_fallthru
          _
        // Predicated region
        $region25: #{feature_extractor.1} parent=11 // pred_check
          %p297 = pneg %p101
        $region26: #{feature_extractor.1} parent=11 // pred_check_branch
          %299 = sbr.rel (%p297) target = $region28
        $region27: #{feature_extractor.1} parent=11 // pred_region
          _
        $region28: #{feature_extractor.1} parent=11 // pred_fallthru
          _
        // Predicated region
        $region29: #{feature_extractor.1} parent=11 // pred_check
          %p300 = pneg %p122
        $region30: #{feature_extractor.1} parent=11 // pred_check_branch
          %302 = sbr.rel (%p300) target = $region32
        $region31: #{feature_extractor.1} parent=11 // pred_region
          _
        $region32: #{feature_extractor.1} parent=11 // pred_fallthru
          _
      $region12: #{feature_extractor.1} parent=5 // pred_fallthru
        _
      %p303 = scmp.lt.s32.totalorder %s17, 2
      // Predicated region
      $region33: #{feature_extractor.1} parent=5 // pred_check
        %p304 = pneg %p303
      $region34: #{feature_extractor.1} parent=5 // pred_check_branch
        %306 = sbr.rel (%p304) target = $region36
      $region35: #{feature_extractor.1} parent=5 // pred_region
        // Predicated region
        $region37: #{feature_extractor.1} parent=35 // pred_check
          %p307 = pneg %p142
        $region38: #{feature_extractor.1} parent=35 // pred_check_branch
          %309 = sbr.rel (%p307) target = $region40
        $region39: #{feature_extractor.1} parent=35 // pred_region
          %p310 = scmp.lt.s32.totalorder %s17, 1
          %s311 = scalar_select %p310, %s17, 1
          %s312 = smul.addr %s311, 8
          %s313 = scalar_lea.vmem %s5, %s312
        $region40: #{feature_extractor.1} parent=35 // pred_fallthru
          _
        // Predicated region
        $region41: #{feature_extractor.1} parent=35 // pred_check
          %p314 = pneg %p168
        $region42: #{feature_extractor.1} parent=35 // pred_check_branch
          %316 = sbr.rel (%p314) target = $region44
        $region43: #{feature_extractor.1} parent=35 // pred_region
          %p317 = scmp.lt.s32.totalorder %s17, 1
          %s318 = scalar_select %p317, %s17, 1
          %s319 = smul.addr %s318, 4
          %s320 = smul.addr %s319, 4
          %s321 = scalar_lea.vmem %s6, %s320
        $region44: #{feature_extractor.1} parent=35 // pred_fallthru
          _
        // Predicated region
        $region45: #{feature_extractor.1} parent=35 // pred_check
          %p322 = pneg %p194
        $region46: #{feature_extractor.1} parent=35 // pred_check_branch
          %324 = sbr.rel (%p322) target = $region48
        $region47: #{feature_extractor.1} parent=35 // pred_region
          %p325 = scmp.lt.s32.totalorder %s17, 1
          %s326 = scalar_select %p325, %s17, 1
          %s327 = smul.addr %s326, 4
          %s328 = smul.addr %s327, 4
          %s329 = scalar_lea.vmem %s7, %s328
        $region48: #{feature_extractor.1} parent=35 // pred_fallthru
          _
        // Predicated region
        $region49: #{feature_extractor.1} parent=35 // pred_check
          %p330 = pneg %p220
        $region50: #{feature_extractor.1} parent=35 // pred_check_branch
          %332 = sbr.rel (%p330) target = $region52
        $region51: #{feature_extractor.1} parent=35 // pred_region
          %p333 = scmp.lt.s32.totalorder %s17, 1
          %s334 = scalar_select %p333, %s17, 1
          %s335 = smul.addr %s334, 4
          %s336 = smul.addr %s335, 4
          %s337 = scalar_lea.vmem %s8, %s336
        $region52: #{feature_extractor.1} parent=35 // pred_fallthru
          _
        // Predicated region
        $region53: #{feature_extractor.1} parent=35 // pred_check
          %p338 = pneg %p246
        $region54: #{feature_extractor.1} parent=35 // pred_check_branch
          %340 = sbr.rel (%p338) target = $region56
        $region55: #{feature_extractor.1} parent=35 // pred_region
          %p341 = scmp.lt.s32.totalorder %s17, 1
          %s342 = scalar_select %p341, %s17, 1
          %s343 = smul.addr %s342, 8
          %s344 = smul.addr %s343, 4
          %s345 = scalar_lea.vmem %s9, %s344
        $region56: #{feature_extractor.1} parent=35 // pred_fallthru
          _
      $region36: #{feature_extractor.1} parent=5 // pred_fallthru
        _
      %p346 = scmp.le.s32.totalorder 1, %s17
      %p347 = scmp.lt.s32.totalorder %s17, 3
      %p348 = pnand %p346, %p347
      %p349 = pneg %p348
      // Predicated region
      $region57: #{feature_extractor.1} parent=5 // pred_check
        _
      $region58: #{feature_extractor.1} parent=5 // pred_check_branch
        %351 = sbr.rel (%p348) target = $region60
      $region59: #{feature_extractor.1} parent=5 // pred_region
        %s352 = ssub.s32 %s17, 1
        %p353 = pneg %p38
        %p354 = pneg %p35
        %p355 = pneg %p59
        %p356 = pneg %p56
        %p357 = pneg %p80
        %p358 = pneg %p77
        %p359 = pneg %p101
        %p360 = pneg %p98
        %p361 = pneg %p122
        %p362 = pneg %p119
        %p363 = scmp.lt.s32.totalorder %s22, 1
        %s364 = scalar_select %p363, %s22, 1
        %s365 = smul.addr %s364, 8
        %s366 = scalar_lea.vmem %s5, %s365
        %p367 = pneg %p148
        %p368 = pneg %p145
        %p369 = scmp.lt.s32.totalorder %s22, 1
        %s370 = scalar_select %p369, %s22, 1
        %s371 = smul.addr %s370, 4
        %s372 = smul.addr %s371, 4
        %s373 = scalar_lea.vmem %s6, %s372
        %p374 = pneg %p174
        %p375 = pneg %p171
        %p376 = scmp.lt.s32.totalorder %s22, 1
        %s377 = scalar_select %p376, %s22, 1
        %s378 = smul.addr %s377, 4
        %s379 = smul.addr %s378, 4
        %s380 = scalar_lea.vmem %s7, %s379
        %p381 = pneg %p200
        %p382 = pneg %p197
        %p383 = scmp.lt.s32.totalorder %s22, 1
        %s384 = scalar_select %p383, %s22, 1
        %s385 = smul.addr %s384, 4
        %s386 = smul.addr %s385, 4
        %s387 = scalar_lea.vmem %s8, %s386
        %p388 = pneg %p226
        %p389 = pneg %p223
        %p390 = scmp.lt.s32.totalorder %s22, 1
        %s391 = scalar_select %p390, %s22, 1
        %s392 = smul.addr %s391, 8
        %s393 = smul.addr %s392, 4
        %s394 = scalar_lea.vmem %s9, %s393
        %p395 = pneg %p252
        %p396 = pneg %p249
        %p397 = pneg %p273
        %p398 = pneg %p270
        %p399 = scmp.lt.s32.totalorder %s22, 1
        %s400 = scalar_select %p399, %s22, 1
        %s401 = smul.addr %s400, 8
        %s402 = scalar_lea.vmem %s5, %s401
        %p403 = scmp.lt.s32.totalorder %s22, 1
        %s404 = scalar_select %p403, %s22, 1
        %s405 = smul.addr %s404, 4
        %s406 = smul.addr %s405, 4
        %s407 = scalar_lea.vmem %s6, %s406
        %p408 = scmp.lt.s32.totalorder %s22, 1
        %s409 = scalar_select %p408, %s22, 1
        %s410 = smul.addr %s409, 4
        %s411 = smul.addr %s410, 4
        %s412 = scalar_lea.vmem %s7, %s411
        %p413 = scmp.lt.s32.totalorder %s22, 1
        %s414 = scalar_select %p413, %s22, 1
        %s415 = smul.addr %s414, 4
        %s416 = smul.addr %s415, 4
        %s417 = scalar_lea.vmem %s8, %s416
        %p418 = scmp.lt.s32.totalorder %s22, 1
        %s419 = scalar_select %p418, %s22, 1
        %s420 = smul.addr %s419, 8
        %s421 = smul.addr %s420, 4
        %s422 = scalar_lea.vmem %s9, %s421
        %p424 = scmp.eq.s32.totalorder %s22, 0
        // Predicated region
        $region61: #{feature_extractor.1} parent=59 // pred_check
          %p425 = pneg %p424
        $region62: #{feature_extractor.1} parent=59 // pred_check_branch
          %427 = sbr.rel (%p425) target = $region64
        $region63: #{feature_extractor.1} parent=59 // pred_region
          %v428 = vld [vmem:[%s0] sm:$0xff]
          %v429 = vld [vmem:[%s0 + $0x8] sm:$0xff]
          %v430 = vld [vmem:[%s1] sm:$0xff]
          %v431 = vld [vmem:[%s1 + $0x8] sm:$0xff]
          %v432 = vld [vmem:[%s1 + $0x10] sm:$0xff]
          %v433 = vld [vmem:[%s1 + $0x18] sm:$0xff]
          %v434 = vld [vmem:[%s1 + $0x20] sm:$0xff]
          %v435 = vld [vmem:[%s1 + $0x28] sm:$0xff]
          %v436 = vld [vmem:[%s1 + $0x30] sm:$0xff]
          %v437 = vld [vmem:[%s1 + $0x38] sm:$0xff]
          %v438 = vld [vmem:[%s1 + $0x40] sm:$0xff]
          %v439 = vld [vmem:[%s1 + $0x48] sm:$0xff]
          %v440 = vld [vmem:[%s1 + $0x50] sm:$0xff]
          %v441 = vld [vmem:[%s1 + $0x58] sm:$0xff]
          %v442 = vld [vmem:[%s1 + $0x60] sm:$0xff]
          %v443 = vld [vmem:[%s1 + $0x68] sm:$0xff]
          %v444 = vld [vmem:[%s1 + $0x70] sm:$0xff]
          %v445 = vld [vmem:[%s1 + $0x78] sm:$0xff]
          %446 = vmatpush.msra.mxu0 %v445
          %447 = vmatpush.msra.mxu0 %v444
          %448 = vmatpush.msra.mxu0 %v443
          %449 = vmatpush.msra.mxu0 %v442
          %450 = vmatpush.msra.mxu0 %v441
          %451 = vmatpush.msra.mxu0 %v440
          %452 = vmatpush.msra.mxu0 %v439
          %453 = vmatpush.msra.mxu0 %v438
          %454 = vmatpush.msra.mxu0 %v437
          %455 = vmatpush.msra.mxu0 %v436
          %456 = vmatpush.msra.mxu0 %v435
          %457 = vmatpush.msra.mxu0 %v434
          %458 = vmatpush.msra.mxu0 %v433
          %459 = vmatpush.msra.mxu0 %v432
          %460 = vmatpush.msra.mxu0 %v431
          %461 = vmatpush.msra.mxu0 %v430
          %462 = vmatmul.f32.gmra.mxu0 %v428
          %v463 = vpop.f32.mrf.mxu0
          %v464 = vadd.f32 0.0, %v463
          %465 = vmatmul.f32.gmra.mxu0 %v429
          %v466 = vpop.f32.mrf.mxu0
          %v467 = vadd.f32 0.0, %v466
          %468 = vdwg.mxu0
          %v469 = vld [vmem:[%s2] sm:$0xff]
          %v470 = vadd.f32 %v464, %v469
          %v471 = vadd.f32 %v467, %v469
          %v472 = vld [vmem:[%s4] sm:$0x1]
          %v473 = vld [vmem:[%s4 + $0x1] sm:$0x1]
          %vm474 = vcmask 261120
          %v475 = vsel %vm474, %v470, 0.0
          %476 = vadd.xlane.f32.xlu0 %v475
          %v477 = vpop.xlane.xlu0 %476
          %v478 = vsel %vm474, %v471, 0.0
          %479 = vadd.xlane.f32.xlu0 %v478
          %v480 = vpop.xlane.xlu0 %479
          %v481 = vrcp.pop 32.0
          %v482 = vmul.f32 32.0, %v481
          %v483 = vsub.f32 1.0, %v482
          %v484 = vmul.f32 %v481, %v483
          %v485 = vadd.f32 %v481, %v484
          %vm486 = vweird.f32 %v481
          %v487 = vsel %vm486, %v481, %v485
          %v488 = vmul.f32 %v477, %v487
          %v489 = vmul.f32 %v480, %v487
          %v490 = vsub.f32 %v470, %v488
          %v491 = vsub.f32 %v471, %v489
          %v492 = vmul.f32 %v490, %v490
          %v493 = vmul.f32 %v491, %v491
          %v494 = vsel %vm474, %v492, 0.0
          %495 = vadd.xlane.f32.xlu0 %v494
          %v496 = vpop.xlane.xlu0 %495
          %v497 = vsel %vm474, %v493, 0.0
          %498 = vadd.xlane.f32.xlu0 %v497
          %v499 = vpop.xlane.xlu0 %498
          %v500 = vmul.f32 %v496, %v487
          %v501 = vmul.f32 %v499, %v487
          %v502 = vadd.f32 %v500, 1e-12
          %v503 = vadd.f32 %v501, 1e-12
          %v504 = vrsqrt.pop %v502
          %v505 = vmul.f32 %v504, %v502
          %v506 = vmul.f32 %v505, %v504
          %v507 = vmul.f32 0.5, %v506
          %v508 = vsub.f32 1.5, %v507
          %v509 = vmul.f32 %v504, %v508
          %vm510 = vweird.f32 %v502
          %vm511 = vweird.f32 %v504
          %vm512 = vmor %vm510, %vm511
          %v513 = vsel %vm512, %v504, %v509
          %v514 = vrsqrt.pop %v503
          %v515 = vmul.f32 %v514, %v503
          %v516 = vmul.f32 %v515, %v514
          %v517 = vmul.f32 0.5, %v516
          %v518 = vsub.f32 1.5, %v517
          %v519 = vmul.f32 %v514, %v518
          %vm520 = vweird.f32 %v503
          %vm521 = vweird.f32 %v514
          %vm522 = vmor %vm520, %vm521
          %v523 = vsel %vm522, %v514, %v519
          %v524 = vmul.f32 %v490, %v513
          %v525 = vmul.f32 %v491, %v523
          %v526 = vperm.slane %v472, 0
          %v527 = vmul.f32 %v524, %v526
          %v528 = vmul.f32 %v525, %v526
          %v529 = vperm.slane %v473, 0
          %v530 = vadd.f32 %v527, %v529
          %v531 = vadd.f32 %v528, %v529
          %532 = vst.msk [vmem:[#allocation2] sm:$0xff] %vm474, %v530
          %533 = vst.msk [vmem:[#allocation2 + $0x8] sm:$0xff] %vm474, %v531
        $region64: #{feature_extractor.1} parent=59 // pred_fallthru
          _
        %v534 = vld [vmem:[#allocation2] sm:$0xff]
        %v535 = vld [vmem:[#allocation2 + $0x8] sm:$0xff]
        %v536 = vld [vmem:[%s402] sm:$0xff]
        %v537 = vld [vmem:[%s407] sm:$0xf]
        %v538 = vld [vmem:[%s407 + $0x4] sm:$0xf]
        %v539 = vld [vmem:[%s407 + $0x8] sm:$0xf]
        %v540 = vld [vmem:[%s407 + $0xc] sm:$0xf]
        %v541 = vld [vmem:[%s412] sm:$0xf]
        %v542 = vld [vmem:[%s412 + $0x4] sm:$0xf]
        %v543 = vld [vmem:[%s412 + $0x8] sm:$0xf]
        %v544 = vld [vmem:[%s412 + $0xc] sm:$0xf]
        %v545 = vld [vmem:[%s417] sm:$0xf]
        %v546 = vld [vmem:[%s417 + $0x4] sm:$0xf]
        %v547 = vld [vmem:[%s417 + $0x8] sm:$0xf]
        %v548 = vld [vmem:[%s417 + $0xc] sm:$0xf]
        %v549 = vld [vmem:[%s422] sm:$0xf]
        %v550 = vld [vmem:[%s422 + $0x4] sm:$0xf]
        %v551 = vld [vmem:[%s422 + $0x8] sm:$0xf]
        %v552 = vld [vmem:[%s422 + $0xc] sm:$0xf]
        %v553 = vld [vmem:[%s422 + $0x10] sm:$0xf]
        %v554 = vld [vmem:[%s422 + $0x14] sm:$0xf]
        %v555 = vld [vmem:[%s422 + $0x18] sm:$0xf]
        %v556 = vld [vmem:[%s422 + $0x1c] sm:$0xf]
        %v557 = vld [vmem:[%s3] sm:$0xff]
        %v558 = vld [vmem:[%s3 + $0x8] sm:$0xff]
        %v559 = vpack.c.bf16 %v535, %v534
        %v560 = vperm.slane %v536, 0
        %v565 = vunpack.c.l.b16 %v537
        %v566 = vunpack.c.l.b16 %v538
        %v567 = vunpack.c.l.b16 %v539
        %v568 = vunpack.c.l.b16 %v540
        %v569 = vpack.c.b16 %v566, %v565
        %v570 = vpack.c.b16 %v568, %v567
        %vm573 = vcmask 261120
        %v575 = vsel %vm573, %v559, 0
        %577 = vmatpush.bf16.msra.mxu0 0
        %578 = vmatpush.bf16.msra.mxu0 0
        %579 = vmatpush.bf16.msra.mxu0 0
        %580 = vmatpush.bf16.msra.mxu0 0
        %581 = vmatpush.bf16.msra.mxu0 0
        %582 = vmatpush.bf16.msra.mxu0 0
        %583 = vmatpush.bf16.msra.mxu0 %v570
        %584 = vmatpush.bf16.msra.mxu0 %v569
        %585 = vmatmul.bf16.gmra.mxu0 %v575
        %v586 = vpop.f32.mrf.mxu0
        %v587 = vadd.f32 %v560, %v586
        %v588 = vpop.f32.mrf.mxu0
        %v589 = vadd.f32 %v560, %v588
        %590 = vdwg.mxu0
        %v591 = vpack.c.bf16 %v587, %v587
        %v592 = vpack.c.bf16 %v589, %v589
        %v594 = vunpack.c.l.b16 %v591
        %v595 = vpack.c.b16 %v594, %v594
        %596 = vrot.lane.b32.xlu0 %v595, 96
        %v597 = vpop.permute.xlu0 %596
        %vm598 = vcmask 130048
        %v600 = vsel %vm598, %v591, 0
        %v603 = vsel %vm598, %v597, 0
        %605 = vmatpush.bf16.xpose.msra.mxu0 0
        %606 = vmatpush.bf16.xpose.msra.mxu0 0
        %607 = vmatpush.bf16.xpose.msra.mxu0 0
        %608 = vmatpush.bf16.xpose.msra.mxu0 0
        %609 = vmatpush.bf16.xpose.msra.mxu0 0
        %610 = vmatpush.bf16.xpose.msra.mxu0 0
        %611 = vmatpush.bf16.xpose.msra.mxu0 0
        %612 = vmatpush.bf16.xpose.msra.mxu0 %v603
        %613 = vmatmul.bf16.gmra.mxu0 %v600
        %v614 = vpop.f32.mrf.mxu0
        %v615 = vadd.f32 0.0, %v614
        %v616 = vpop.f32.mrf.mxu0
        %617 = vdwg.mxu0
        %v619 = vunpack.c.l.b16 %v592
        %v620 = vpack.c.b16 %v619, %v619
        %621 = vrot.lane.b32.xlu0 %v620, 96
        %v622 = vpop.permute.xlu0 %621
        %v624 = vsel %vm598, %v592, 0
        %v627 = vsel %vm598, %v622, 0
        %629 = vmatpush.bf16.xpose.msra.mxu0 0
        %630 = vmatpush.bf16.xpose.msra.mxu0 0
        %631 = vmatpush.bf16.xpose.msra.mxu0 0
        %632 = vmatpush.bf16.xpose.msra.mxu0 0
        %633 = vmatpush.bf16.xpose.msra.mxu0 0
        %634 = vmatpush.bf16.xpose.msra.mxu0 0
        %635 = vmatpush.bf16.xpose.msra.mxu0 0
        %636 = vmatpush.bf16.xpose.msra.mxu0 %v627
        %637 = vmatmul.bf16.gmra.mxu0 %v624
        %v638 = vpop.f32.mrf.mxu0
        %v639 = vadd.f32 0.0, %v638
        %v640 = vpop.f32.mrf.mxu0
        %641 = vdwg.mxu0
        %v642 = vmul.f32 %v615, 0.25
        %v643 = vmul.f32 %v639, 0.25
        %v644 = vadd.f32 %v642, %v557
        %v645 = vadd.f32 %v643, %v558
        %vm646 = vcmask 64512
        %v647 = vsel %vm646, %v644, -inf
        %648 = vmax.xlane.f32.xlu0 %v647
        %v649 = vpop.xlane.xlu0 %648
        %v650 = vsel %vm646, %v645, -inf
        %651 = vmax.xlane.f32.xlu0 %v650
        %v652 = vpop.xlane.xlu0 %651
        %v653 = vsub.f32 %v644, %v649
        %v654 = vsub.f32 %v645, %v652
        %v655 = vmul.f32 %v653, 1.442695
        %v656 = vpow.pop %v655
        %v657 = vmul.f32 %v654, 1.442695
        %v658 = vpow.pop %v657
        %v659 = vsel %vm646, %v656, 0.0
        %660 = vadd.xlane.f32.xlu0 %v659
        %v661 = vpop.xlane.xlu0 %660
        %v662 = vsel %vm646, %v658, 0.0
        %663 = vadd.xlane.f32.xlu0 %v662
        %v664 = vpop.xlane.xlu0 %663
        %v665 = vrcp.pop %v661
        %v666 = vrcp.pop %v664
        %v667 = vmul.f32 %v656, %v665
        %v668 = vmul.f32 %v658, %v666
        %v669 = vpack.c.bf16 %v667, %v667
        %v670 = vpack.c.bf16 %v668, %v668
        %671 = vrot.lane.b32.xlu0 %v595, 64
        %v672 = vpop.permute.xlu0 %671
        %v674 = vsel %vm646, %v669, 0
        %vm676 = vcmask 1043456
        %v678 = vsel %vm676, %v672, 0
        %680 = vmatpush.bf16.msra.mxu0 0
        %681 = vmatpush.bf16.msra.mxu0 0
        %682 = vmatpush.bf16.msra.mxu0 0
        %683 = vmatpush.bf16.msra.mxu0 0
        %684 = vmatpush.bf16.msra.mxu0 0
        %685 = vmatpush.bf16.msra.mxu0 0
        %686 = vmatpush.bf16.msra.mxu0 0
        %687 = vmatpush.bf16.msra.mxu0 %v678
        %688 = vmatmul.bf16.gmra.mxu0 %v674
        %v689 = vpop.f32.mrf.mxu0
        %v690 = vadd.f32 0.0, %v689
        %v691 = vpop.f32.mrf.mxu0
        %692 = vdwg.mxu0
        %693 = vrot.lane.b32.xlu0 %v620, 64
        %v694 = vpop.permute.xlu0 %693
        %v696 = vsel %vm646, %v670, 0
        %v699 = vsel %vm676, %v694, 0
        %701 = vmatpush.bf16.msra.mxu0 0
        %702 = vmatpush.bf16.msra.mxu0 0
        %703 = vmatpush.bf16.msra.mxu0 0
        %704 = vmatpush.bf16.msra.mxu0 0
        %705 = vmatpush.bf16.msra.mxu0 0
        %706 = vmatpush.bf16.msra.mxu0 0
        %707 = vmatpush.bf16.msra.mxu0 0
        %708 = vmatpush.bf16.msra.mxu0 %v699
        %709 = vmatmul.bf16.gmra.mxu0 %v696
        %v710 = vpop.f32.mrf.mxu0
        %v711 = vadd.f32 0.0, %v710
        %v712 = vpop.f32.mrf.mxu0
        %713 = vdwg.mxu0
        %v714 = vpack.c.bf16 %v711, %v690
        %715 = vrot.lane.b32.xlu0 %v595, 112
        %v716 = vpop.permute.xlu0 %715
        %717 = vrot.lane.b32.xlu0 %v595, 80
        %v718 = vpop.permute.xlu0 %717
        %v720 = vsel %vm598, %v716, 0
        %v723 = vsel %vm598, %v718, 0
        %725 = vmatpush.bf16.xpose.msra.mxu0 0
        %726 = vmatpush.bf16.xpose.msra.mxu0 0
        %727 = vmatpush.bf16.xpose.msra.mxu0 0
        %728 = vmatpush.bf16.xpose.msra.mxu0 0
        %729 = vmatpush.bf16.xpose.msra.mxu0 0
        %730 = vmatpush.bf16.xpose.msra.mxu0 0
        %731 = vmatpush.bf16.xpose.msra.mxu0 0
        %732 = vmatpush.bf16.xpose.msra.mxu0 %v723
        %733 = vmatmul.bf16.gmra.mxu0 %v720
        %v734 = vpop.f32.mrf.mxu0
        %v735 = vadd.f32 0.0, %v734
        %v736 = vpop.f32.mrf.mxu0
        %737 = vdwg.mxu0
        %738 = vrot.lane.b32.xlu0 %v620, 112
        %v739 = vpop.permute.xlu0 %738
        %740 = vrot.lane.b32.xlu0 %v620, 80
        %v741 = vpop.permute.xlu0 %740
        %v743 = vsel %vm598, %v739, 0
        %v746 = vsel %vm598, %v741, 0
        %748 = vmatpush.bf16.xpose.msra.mxu0 0
        %749 = vmatpush.bf16.xpose.msra.mxu0 0
        %750 = vmatpush.bf16.xpose.msra.mxu0 0
        %751 = vmatpush.bf16.xpose.msra.mxu0 0
        %752 = vmatpush.bf16.xpose.msra.mxu0 0
        %753 = vmatpush.bf16.xpose.msra.mxu0 0
        %754 = vmatpush.bf16.xpose.msra.mxu0 0
        %755 = vmatpush.bf16.xpose.msra.mxu0 %v746
        %756 = vmatmul.bf16.gmra.mxu0 %v743
        %v757 = vpop.f32.mrf.mxu0
        %v758 = vadd.f32 0.0, %v757
        %v759 = vpop.f32.mrf.mxu0
        %760 = vdwg.mxu0
        %v761 = vmul.f32 %v735, 0.25
        %v762 = vmul.f32 %v758, 0.25
        %v763 = vadd.f32 %v761, %v557
        %v764 = vadd.f32 %v762, %v558
        %v765 = vsel %vm646, %v763, -inf
        %766 = vmax.xlane.f32.xlu0 %v765
        %v767 = vpop.xlane.xlu0 %766
        %v768 = vsel %vm646, %v764, -inf
        %769 = vmax.xlane.f32.xlu0 %v768
        %v770 = vpop.xlane.xlu0 %769
        %v771 = vsub.f32 %v763, %v767
        %v772 = vsub.f32 %v764, %v770
        %v773 = vmul.f32 %v771, 1.442695
        %v774 = vpow.pop %v773
        %v775 = vmul.f32 %v772, 1.442695
        %v776 = vpow.pop %v775
        %v777 = vsel %vm646, %v774, 0.0
        %778 = vadd.xlane.f32.xlu0 %v777
        %v779 = vpop.xlane.xlu0 %778
        %v780 = vsel %vm646, %v776, 0.0
        %781 = vadd.xlane.f32.xlu0 %v780
        %v782 = vpop.xlane.xlu0 %781
        %v783 = vrcp.pop %v779
        %v784 = vrcp.pop %v782
        %v785 = vmul.f32 %v774, %v783
        %v786 = vmul.f32 %v776, %v784
        %v787 = vpack.c.bf16 %v785, %v785
        %v788 = vpack.c.bf16 %v786, %v786
        %789 = vrot.lane.b32.xlu0 %v595, 48
        %v790 = vpop.permute.xlu0 %789
        %v792 = vsel %vm646, %v787, 0
        %v795 = vsel %vm676, %v790, 0
        %797 = vmatpush.bf16.msra.mxu0 0
        %798 = vmatpush.bf16.msra.mxu0 0
        %799 = vmatpush.bf16.msra.mxu0 0
        %800 = vmatpush.bf16.msra.mxu0 0
        %801 = vmatpush.bf16.msra.mxu0 0
        %802 = vmatpush.bf16.msra.mxu0 0
        %803 = vmatpush.bf16.msra.mxu0 0
        %804 = vmatpush.bf16.msra.mxu0 %v795
        %805 = vmatmul.bf16.gmra.mxu0 %v792
        %v806 = vpop.f32.mrf.mxu0
        %v807 = vadd.f32 0.0, %v806
        %v808 = vpop.f32.mrf.mxu0
        %809 = vdwg.mxu0
        %810 = vrot.lane.b32.xlu0 %v620, 48
        %v811 = vpop.permute.xlu0 %810
        %v813 = vsel %vm646, %v788, 0
        %v816 = vsel %vm676, %v811, 0
        %818 = vmatpush.bf16.msra.mxu0 0
        %819 = vmatpush.bf16.msra.mxu0 0
        %820 = vmatpush.bf16.msra.mxu0 0
        %821 = vmatpush.bf16.msra.mxu0 0
        %822 = vmatpush.bf16.msra.mxu0 0
        %823 = vmatpush.bf16.msra.mxu0 0
        %824 = vmatpush.bf16.msra.mxu0 0
        %825 = vmatpush.bf16.msra.mxu0 %v816
        %826 = vmatmul.bf16.gmra.mxu0 %v813
        %v827 = vpop.f32.mrf.mxu0
        %v828 = vadd.f32 0.0, %v827
        %v829 = vpop.f32.mrf.mxu0
        %830 = vdwg.mxu0
        %v831 = vpack.c.bf16 %v828, %v807
        %v834 = vunpack.c.l.b16 %v543
        %v835 = vunpack.c.l.b16 %v544
        %v836 = vpack.c.b16 %v835, %v834
        %v839 = vsel %vm598, %v831, 0
        %841 = vmatpush.bf16.msra.mxu0 0
        %842 = vmatpush.bf16.msra.mxu0 0
        %843 = vmatpush.bf16.msra.mxu0 0
        %844 = vmatpush.bf16.msra.mxu0 0
        %845 = vmatpush.bf16.msra.mxu0 0
        %846 = vmatpush.bf16.msra.mxu0 0
        %847 = vmatpush.bf16.msra.mxu0 0
        %848 = vmatpush.bf16.msra.mxu0 %v836
        %849 = vmatmul.bf16.gmra.mxu0 %v839
        %v850 = vpop.f32.mrf.mxu0
        %v851 = vadd.f32 0.0, %v850
        %v852 = vpop.f32.mrf.mxu0
        %v853 = vadd.f32 0.0, %v852
        %854 = vdwg.mxu0
        %v857 = vunpack.c.l.b16 %v541
        %v858 = vunpack.c.l.b16 %v542
        %v859 = vpack.c.b16 %v858, %v857
        %v862 = vsel %vm598, %v714, 0
        %864 = vmatpush.bf16.msra.mxu0 0
        %865 = vmatpush.bf16.msra.mxu0 0
        %866 = vmatpush.bf16.msra.mxu0 0
        %867 = vmatpush.bf16.msra.mxu0 0
        %868 = vmatpush.bf16.msra.mxu0 0
        %869 = vmatpush.bf16.msra.mxu0 0
        %870 = vmatpush.bf16.msra.mxu0 0
        %871 = vmatpush.bf16.msra.mxu0 %v859
        %872 = vmatmul.bf16.gmra.mxu0 %v862
        %v873 = vpop.f32.mrf.mxu0
        %v874 = vadd.f32 %v851, %v873
        %v875 = vpop.f32.mrf.mxu0
        %v876 = vadd.f32 %v853, %v875
        %877 = vdwg.mxu0
        %v878 = vperm.slane %v536, 1
        %v879 = vadd.f32 %v874, %v878
        %v880 = vadd.f32 %v876, %v878
        %v881 = vadd.f32 %v534, %v879
        %v882 = vadd.f32 %v535, %v880
        %v883 = vsel %vm573, %v881, 0.0
        %884 = vadd.xlane.f32.xlu0 %v883
        %v885 = vpop.xlane.xlu0 %884
        %v886 = vsel %vm573, %v882, 0.0
        %887 = vadd.xlane.f32.xlu0 %v886
        %v888 = vpop.xlane.xlu0 %887
        %v889 = vrcp.pop 32.0
        %v890 = vmul.f32 32.0, %v889
        %v891 = vsub.f32 1.0, %v890
        %v892 = vmul.f32 %v889, %v891
        %v893 = vadd.f32 %v889, %v892
        %vm894 = vweird.f32 %v889
        %v895 = vsel %vm894, %v889, %v893
        %v896 = vmul.f32 %v885, %v895
        %v897 = vmul.f32 %v888, %v895
        %v898 = vsub.f32 %v881, %v896
        %v899 = vsub.f32 %v882, %v897
        %v900 = vmul.f32 %v898, %v898
        %v901 = vmul.f32 %v899, %v899
        %v902 = vsel %vm573, %v900, 0.0
        %903 = vadd.xlane.f32.xlu0 %v902
        %v904 = vpop.xlane.xlu0 %903
        %v905 = vsel %vm573, %v901, 0.0
        %906 = vadd.xlane.f32.xlu0 %v905
        %v907 = vpop.xlane.xlu0 %906
        %v908 = vmul.f32 %v904, %v895
        %v909 = vmul.f32 %v907, %v895
        %v910 = vadd.f32 %v908, 1e-12
        %v911 = vadd.f32 %v909, 1e-12
        %v912 = vrsqrt.pop %v910
        %v913 = vmul.f32 %v912, %v910
        %v914 = vmul.f32 %v913, %v912
        %v915 = vmul.f32 0.5, %v914
        %v916 = vsub.f32 1.5, %v915
        %v917 = vmul.f32 %v912, %v916
        %vm918 = vweird.f32 %v910
        %vm919 = vweird.f32 %v912
        %vm920 = vmor %vm918, %vm919
        %v921 = vsel %vm920, %v912, %v917
        %v922 = vrsqrt.pop %v911
        %v923 = vmul.f32 %v922, %v911
        %v924 = vmul.f32 %v923, %v922
        %v925 = vmul.f32 0.5, %v924
        %v926 = vsub.f32 1.5, %v925
        %v927 = vmul.f32 %v922, %v926
        %vm928 = vweird.f32 %v911
        %vm929 = vweird.f32 %v922
        %vm930 = vmor %vm928, %vm929
        %v931 = vsel %vm930, %v922, %v927
        %v932 = vmul.f32 %v898, %v921
        %v933 = vmul.f32 %v899, %v931
        %v934 = vperm.slane %v536, 2
        %v935 = vmul.f32 %v932, %v934
        %v936 = vmul.f32 %v933, %v934
        %v937 = vperm.slane %v536, 3
        %v938 = vadd.f32 %v935, %v937
        %v939 = vadd.f32 %v936, %v937
        %v940 = vpack.c.bf16 %v939, %v938
        %v941 = vperm.slane %v536, 4
        %v946 = vunpack.c.l.b16 %v545
        %v947 = vunpack.c.l.b16 %v546
        %v948 = vunpack.c.l.b16 %v547
        %v949 = vunpack.c.l.b16 %v548
        %v950 = vpack.c.b16 %v947, %v946
        %v951 = vpack.c.b16 %v949, %v948
        %v955 = vsel %vm573, %v940, 0
        %957 = vmatpush.bf16.msra.mxu0 0
        %958 = vmatpush.bf16.msra.mxu0 0
        %959 = vmatpush.bf16.msra.mxu0 0
        %960 = vmatpush.bf16.msra.mxu0 0
        %961 = vmatpush.bf16.msra.mxu0 0
        %962 = vmatpush.bf16.msra.mxu0 0
        %963 = vmatpush.bf16.msra.mxu0 %v951
        %964 = vmatpush.bf16.msra.mxu0 %v950
        %965 = vmatmul.bf16.gmra.mxu0 %v955
        %v966 = vpop.f32.mrf.mxu0
        %v967 = vadd.f32 %v941, %v966
        %v968 = vpop.f32.mrf.mxu0
        %v969 = vadd.f32 %v941, %v968
        %970 = vdwg.mxu0
        %v971 = vmul.f32 %v967, %v967
        %v972 = vmul.f32 %v969, %v969
        %v973 = vmul.f32 %v967, %v971
        %v974 = vmul.f32 %v969, %v972
        %v975 = vmul.f32 %v973, 0.044715
        %v976 = vmul.f32 %v974, 0.044715
        %v977 = vadd.f32 %v967, %v975
        %v978 = vadd.f32 %v969, %v976
        %v979 = vmul.f32 %v977, 0.7978846
        %v980 = vmul.f32 %v978, 0.7978846
        %v981 = vtanh.pop %v979
        %v982 = vtanh.pop %v980
        %v983 = vadd.f32 %v981, 1.0
        %v984 = vadd.f32 %v982, 1.0
        %v985 = vmul.f32 %v983, 0.5
        %v986 = vmul.f32 %v984, 0.5
        %v987 = vmul.f32 %v967, %v985
        %v988 = vmul.f32 %v969, %v986
        %v989 = vpack.c.bf16 %v988, %v987
        %v990 = vperm.slane %v536, 5
        %v999 = vunpack.c.l.b16 %v549
        %v1000 = vunpack.c.l.b16 %v550
        %v1001 = vunpack.c.l.b16 %v551
        %v1002 = vunpack.c.l.b16 %v552
        %v1003 = vunpack.c.l.b16 %v553
        %v1004 = vunpack.c.l.b16 %v554
        %v1005 = vunpack.c.l.b16 %v555
        %v1006 = vunpack.c.l.b16 %v556
        %v1007 = vpack.c.b16 %v1000, %v999
        %v1008 = vpack.c.b16 %v1002, %v1001
        %v1009 = vpack.c.b16 %v1004, %v1003
        %v1010 = vpack.c.b16 %v1006, %v1005
        %vm1015 = vcmask 523264
        %v1017 = vsel %vm1015, %v989, 0
        %1019 = vmatpush.bf16.msra.mxu0 0
        %1020 = vmatpush.bf16.msra.mxu0 0
        %1021 = vmatpush.bf16.msra.mxu0 0
        %1022 = vmatpush.bf16.msra.mxu0 0
        %1023 = vmatpush.bf16.msra.mxu0 %v1010
        %1024 = vmatpush.bf16.msra.mxu0 %v1009
        %1025 = vmatpush.bf16.msra.mxu0 %v1008
        %1026 = vmatpush.bf16.msra.mxu0 %v1007
        %1027 = vmatmul.bf16.gmra.mxu0 %v1017
        %v1028 = vpop.f32.mrf.mxu0
        %v1029 = vadd.f32 %v990, %v1028
        %v1030 = vpop.f32.mrf.mxu0
        %v1031 = vadd.f32 %v990, %v1030
        %1032 = vdwg.mxu0
        %v1033 = vadd.f32 %v938, %v1029
        %v1034 = vadd.f32 %v939, %v1031
        %v1035 = vsel %vm573, %v1033, 0.0
        %1036 = vadd.xlane.f32.xlu0 %v1035
        %v1037 = vpop.xlane.xlu0 %1036
        %v1038 = vsel %vm573, %v1034, 0.0
        %1039 = vadd.xlane.f32.xlu0 %v1038
        %v1040 = vpop.xlane.xlu0 %1039
        %v1041 = vmul.f32 %v1037, %v895
        %v1042 = vmul.f32 %v1040, %v895
        %v1043 = vsub.f32 %v1033, %v1041
        %v1044 = vsub.f32 %v1034, %v1042
        %v1045 = vmul.f32 %v1043, %v1043
        %v1046 = vmul.f32 %v1044, %v1044
        %v1047 = vsel %vm573, %v1045, 0.0
        %1048 = vadd.xlane.f32.xlu0 %v1047
        %v1049 = vpop.xlane.xlu0 %1048
        %v1050 = vsel %vm573, %v1046, 0.0
        %1051 = vadd.xlane.f32.xlu0 %v1050
        %v1052 = vpop.xlane.xlu0 %1051
        %v1053 = vmul.f32 %v1049, %v895
        %v1054 = vmul.f32 %v1052, %v895
        %v1055 = vadd.f32 %v1053, 1e-12
        %v1056 = vadd.f32 %v1054, 1e-12
        %v1057 = vrsqrt.pop %v1055
        %v1058 = vmul.f32 %v1057, %v1055
        %v1059 = vmul.f32 %v1058, %v1057
        %v1060 = vmul.f32 0.5, %v1059
        %v1061 = vsub.f32 1.5, %v1060
        %v1062 = vmul.f32 %v1057, %v1061
        %vm1063 = vweird.f32 %v1055
        %vm1064 = vweird.f32 %v1057
        %vm1065 = vmor %vm1063, %vm1064
        %v1066 = vsel %vm1065, %v1057, %v1062
        %v1067 = vrsqrt.pop %v1056
        %v1068 = vmul.f32 %v1067, %v1056
        %v1069 = vmul.f32 %v1068, %v1067
        %v1070 = vmul.f32 0.5, %v1069
        %v1071 = vsub.f32 1.5, %v1070
        %v1072 = vmul.f32 %v1067, %v1071
        %vm1073 = vweird.f32 %v1056
        %vm1074 = vweird.f32 %v1067
        %vm1075 = vmor %vm1073, %vm1074
        %v1076 = vsel %vm1075, %v1067, %v1072
        %v1077 = vmul.f32 %v1043, %v1066
        %v1078 = vmul.f32 %v1044, %v1076
        %v1079 = vperm.slane %v536, 6
        %v1080 = vmul.f32 %v1077, %v1079
        %v1081 = vmul.f32 %v1078, %v1079
        %v1082 = vperm.slane %v536, 7
        %v1083 = vadd.f32 %v1080, %v1082
        %v1084 = vadd.f32 %v1081, %v1082
        %1085 = vst.msk [vmem:[#allocation2] sm:$0xff] %vm573, %v1083
        %1086 = vst.msk [vmem:[#allocation2 + $0x8] sm:$0xff] %vm573, %v1084
        %p1087 = scmp.eq.s32.totalorder %s22, 1
        // Predicated region
        $region65: #{feature_extractor.1} parent=59 // pred_check
          %p1088 = pneg %p1087
        $region66: #{feature_extractor.1} parent=59 // pred_check_branch
          %1090 = sbr.rel (%p1088) target = $region68
        $region67: #{feature_extractor.1} parent=59 // pred_region
          %v1092 = vrot.slane %v1084, 7
          %vm1094 = vcmask 1040384
          %v1095 = vsel %vm1094, %v1083, %v1092
          %vm1096 = vcmask 254976
          %1097 = vst.msk [vmem:[#allocation3] sm:$0x3] %vm1096, %v1095
        $region68: #{feature_extractor.1} parent=59 // pred_fallthru
          _
        // Predicated region
        $region69: #{feature_extractor.1} parent=59 // pred_check
          %p1098 = pneg %p270
        $region70: #{feature_extractor.1} parent=59 // pred_check_branch
          %1100 = sbr.rel (%p1098) target = $region72
        $region71: #{feature_extractor.1} parent=59 // pred_region
          %1102 = vsyncadd [#allocation4], 0
          %s1104 = sshll.u32 [#allocation3], 4
          %s1105 = int_to_ptr.vmem [resolvable:$true] %s1104
          %s1106 = sshll.u32 %s10, 4
          %s1107 = int_to_ptr.hbm [resolvable:$true] %s1106
          %1109 = dma.vmem_to_hbm [thread:$0]  %s1105, 32, %s1107, [#allocation4]
        $region72: #{feature_extractor.1} parent=59 // pred_fallthru
          _
        // Predicated region
        $region73: #{feature_extractor.1} parent=59 // pred_check
          %p1110 = pneg %p270
        $region74: #{feature_extractor.1} parent=59 // pred_check_branch
          %1112 = sbr.rel (%p1110) target = $region76
        $region75: #{feature_extractor.1} parent=59 // pred_region
          %1114 = dma.done [#allocation4], 32
        $region76: #{feature_extractor.1} parent=59 // pred_fallthru
          _
      $region60: #{feature_extractor.1} parent=5 // pred_fallthru
        _
      %p1115 = scmp.le.s32.totalorder 2, %s17
      // Predicated region
      $region77: #{feature_extractor.1} parent=5 // pred_check
        %p1116 = pneg %p1115
      $region78: #{feature_extractor.1} parent=5 // pred_check_branch
        %1118 = sbr.rel (%p1116) target = $region80
      $region79: #{feature_extractor.1} parent=5 // pred_region
        %s1119 = ssub.s32 %s17, 2
      $region80: #{feature_extractor.1} parent=5 // pred_fallthru
        _
    $region6: #{feature_extractor.1} parent=1 // loop_footer
      %s21 = sadd.s32 1, %s17
    $region7: #{feature_extractor.1} parent=1 // loop_footer_branch
      %16 = sbr.rel target = $region3
    $region8: #{feature_extractor.1} parent=1 // loop_exit
      _
    %1120 = vsyncpa [#allocation4], 1
    %s1121 = scalar_lea.sflag [#allocation4], 1
    %1122 = vsyncpa %s1121, 1

</llo_original>
